<compile_context>
chip_gen: v7x
topology: tpu7x:2x2x1
jax: 0.10.0
libtpu: 0.0.40
codegen_flags: <defaults>
</compile_context>

<pallas_src>
import numpy as np
import jax
import jax.numpy as jnp
from jax.experimental import pallas as pl
from jax.experimental.pallas import tpu as pltpu


def _fre_embedding_kernel(x_ref, wt_ref, d_ref, out_ref):
    # x_ref:   (TB, T, C)   bf16   TB permuted (b*v) rows of the input
    # wt_ref:  (C, E)       f32    W^T of the token-embedding Linear
    # d_ref:   (Kp, T)      bf16   stacked [cos; -sin] DFT matrix (ortho-scaled,
    #                              zero-padded to Kp = round_up(2F, 8) rows)
    # out_ref: (TB, Kp, E)  f32    rows 0:F = Re, rows F:2F = Im (rest = padding)
    tb, t, c = x_ref.shape
    kp = d_ref.shape[0]
    e = wt_ref.shape[1]

    # Step 1: DFT along T (the *large* contraction, K = T), batched over the TB
    # rows as a standard batched matmul (bf16 x bf16 -> f32 accumulate).
    d_b = jnp.broadcast_to(d_ref[...][None, :, :], (tb, kp, t))
    z = jnp.einsum("bkt,btc->bkc", d_b, x_ref[...],
                   preferred_element_type=jnp.float32)          # (TB, Kp, C) f32

    # Step 2: token embedding (tiny K = C contraction) as one large 2-D matmul
    # with M = TB*Kp.  Kp is a multiple of 8 so the merge reshape is layout-free.
    # Kept in f32 (negligible FLOPs, preserves precision of the f32 accumulator).
    z2 = z.reshape(tb * kp, c)
    out = jnp.dot(z2, wt_ref[...], preferred_element_type=jnp.float32)  # (TB*Kp, E)
    out_ref[...] = out.reshape(tb, kp, e)


def _pick_tb(bv, t, c, kp, e, vmem_budget_bytes=8 << 20):
    """Largest divisor TB of BV whose double-buffered in+out blocks fit a
    conservative VMEM budget (safe on v5e/v6e/v7x) while keeping >= 2 grid
    steps so the 'parallel' axis can feed both v7x TensorCores."""
    divisors = [tb for tb in range(1, bv + 1) if bv % tb == 0]
    fitting = [tb for tb in divisors
               if 2 * (tb * t * c * 2 + tb * kp * e * 4) <= vmem_budget_bytes]
    if not fitting:
        return 1
    multi_step = [tb for tb in fitting if bv // tb >= 2]
    return max(multi_step) if multi_step else max(fitting)


def fre_embedding2(x, weight):
    """x: (B, C, T, V) float32; weight: (E, C) float32 (Linear weight, no bias).

    Returns complex64 of shape (B, V, T//2+1, E), matching
    torch.fft.rfft(tokenEmb(x.permute(0,3,2,1)), dim=2, norm='ortho').
    """
    B, C, T, V = x.shape
    E = weight.shape[0]
    F = T // 2 + 1
    Kp = ((2 * F + 7) // 8) * 8          # stacked [cos; -sin] rows, 8-sublane aligned
    BV = B * V

    # Glue: cast to bf16 *before* the permute so the relayout moves half the bytes.
    # TODO(synk): fold this permute into the kernel (read native (B,C,T,V) blocks)
    # to save one HBM pass; kept in XLA here for lowering robustness.
    xp = jnp.transpose(x.astype(jnp.bfloat16), (0, 3, 2, 1)).reshape(BV, T, C)
    wt = jnp.transpose(weight).astype(jnp.float32)               # (C, E), tiny -> keep f32

    # Stacked real-DFT matrix with 'ortho' normalization baked in, zero-padded.
    k = np.arange(F)[:, None]
    t = np.arange(T)[None, :]
    ang = 2.0 * np.pi * k * t / T
    scale = 1.0 / np.sqrt(T)
    d_np = np.zeros((Kp, T), dtype=np.float32)
    d_np[:F] = np.cos(ang) * scale
    d_np[F:2 * F] = -np.sin(ang) * scale
    d = jnp.asarray(d_np, dtype=jnp.bfloat16)                    # (Kp, T)

    TB = _pick_tb(BV, T, C, Kp, E)
    grid = (BV // TB,)

    macs = BV * Kp * T * C + BV * Kp * C * E
    cost = pl.CostEstimate(
        flops=2 * macs,
        transcendentals=0,
        bytes_accessed=BV * T * C * 2 + C * E * 4 + Kp * T * 2 + BV * Kp * E * 4,
    )

    out = pl.pallas_call(
        _fre_embedding_kernel,
        out_shape=jax.ShapeDtypeStruct((BV, Kp, E), jnp.float32),
        grid_spec=pltpu.PrefetchScalarGridSpec(
            num_scalar_prefetch=0,
            grid=grid,
            in_specs=[
                pl.BlockSpec((TB, T, C), lambda i: (i, 0, 0)),
                # Constant-index blocks: fetched once and kept resident.  For very
                # large T they could also be single-buffered (pl.Buffered(1)) to
                # free VMEM for a larger TB; negligible here.
                pl.BlockSpec((C, E), lambda i: (0, 0)),
                pl.BlockSpec((Kp, T), lambda i: (0, 0)),
            ],
            out_specs=pl.BlockSpec((TB, Kp, E), lambda i: (i, 0, 0)),
        ),
        compiler_params=pltpu.CompilerParams(
            dimension_semantics=("parallel",),
        ),
        cost_estimate=cost,
    )(xp, wt, d)

    re = out[:, :F, :]
    im = out[:, F:2 * F, :]
    return jax.lax.complex(re, im).reshape(B, V, F, E)


def _reference(x, weight):
    xp = jnp.transpose(x, (0, 3, 2, 1))                 # (B, V, T, C)
    y = jnp.einsum("bvtc,ec->bvte", xp, weight)         # (B, V, T, E)
    return jnp.fft.rfft(y, axis=2, norm="ortho")        # (B, V, F, E) complex64


if __name__ == "__main__":
    B, C, T, V, E = 2, 4, 16, 16, 32

    key = jax.random.PRNGKey(0)
    kx, kw = jax.random.split(key)
    x = jax.random.normal(kx, (B, C, T, V), dtype=jnp.float32)
    weight = jax.random.normal(kw, (E, C), dtype=jnp.float32) * (1.0 / np.sqrt(C))

    fn = jax.jit(fre_embedding2)
    out = jax.block_until_ready(fn(x, weight))

    ref = _reference(x, weight)
    assert out.shape == (B, V, T // 2 + 1, E)
    assert out.dtype == jnp.complex64
    # bf16 inputs (f32 accumulation) => slightly looser tolerance vs. the f32 reference.
    np.testing.assert_allclose(np.asarray(out), np.asarray(ref), rtol=5e-2, atol=5e-2)

    print("KERNEL_OK")
</pallas_src>

<mosaic_0001>
module attributes {stable_mosaic.version = 11 : i64} {
  func.func @_fre_embedding_kernel(%arg0: i32, %arg1: memref<16x16x4xbf16, #tpu.memory_space<vmem>>, %arg2: memref<4x32xf32, #tpu.memory_space<vmem>>, %arg3: memref<24x16xbf16, #tpu.memory_space<vmem>>, %arg4: memref<16x24x32xf32, #tpu.memory_space<vmem>>) attributes {dimension_semantics = [#tpu.dimension_semantics<parallel>], iteration_bounds = array<i64: 2>, scalar_prefetch = 0 : i64, scratch_operands = 0 : i64, tpu.core_type = #tpu.core_type<tc>, window_params = [{transform_indices = @transform_0, window_bounds = array<i64: 16, 16, 4>}, {pipeline_mode = #tpu.pipeline_mode<synchronous>, transform_indices = @transform_1, window_bounds = array<i64: 4, 32>}, {pipeline_mode = #tpu.pipeline_mode<synchronous>, transform_indices = @transform_2, window_bounds = array<i64: 24, 16>}, {transform_indices = @transform_3, window_bounds = array<i64: 16, 24, 32>}]} {
    %c0 = arith.constant 0 : index
    %c0_0 = arith.constant 0 : index
    %0 = vector.load %arg3[%c0, %c0_0] : memref<24x16xbf16, #tpu.memory_space<vmem>>, vector<24x16xbf16>
    %1 = vector.shape_cast %0 : vector<24x16xbf16> to vector<1x24x16xbf16>
    %2 = vector.shape_cast %1 : vector<1x24x16xbf16> to vector<1x24x16xbf16>
    %3 = vector.broadcast %2 : vector<1x24x16xbf16> to vector<16x24x16xbf16>
    %c0_1 = arith.constant 0 : index
    %c0_2 = arith.constant 0 : index
    %c0_3 = arith.constant 0 : index
    %4 = vector.load %arg1[%c0_1, %c0_2, %c0_3] : memref<16x16x4xbf16, #tpu.memory_space<vmem>>, vector<16x16x4xbf16>
    "tpu.trace_start"() <{level = 10 : i32, message = "bkt,btc->bkc"}> : () -> ()
    %cst = arith.constant dense<0.000000e+00> : vector<16x24x4xf32>
    %5 = tpu.matmul %3, %4, %cst {dimension_numbers = #tpu.dot_dimension_numbers<[2], [1], [1], [2], [0, 0, 0, 1, 1, 2], [0], [0]>} : vector<16x24x16xbf16>, vector<16x16x4xbf16>, vector<16x24x4xf32> -> vector<16x24x4xf32>
    "tpu.trace_stop"() : () -> ()
    %6 = vector.shape_cast %5 : vector<16x24x4xf32> to vector<384x4xf32>
    %c0_4 = arith.constant 0 : index
    %c0_5 = arith.constant 0 : index
    %7 = vector.load %arg2[%c0_4, %c0_5] : memref<4x32xf32, #tpu.memory_space<vmem>>, vector<4x32xf32>
    %cst_6 = arith.constant dense<0.000000e+00> : vector<384x32xf32>
    %8 = tpu.matmul %6, %7, %cst_6 {dimension_numbers = #tpu.dot_dimension_numbers<[1], [0], [0], [1], [0, 0, 1, 1], [], []>} : vector<384x4xf32>, vector<4x32xf32>, vector<384x32xf32> -> vector<384x32xf32>
    %9 = vector.shape_cast %8 : vector<384x32xf32> to vector<16x24x32xf32>
    %c0_7 = arith.constant 0 : index
    %c0_8 = arith.constant 0 : index
    %c0_9 = arith.constant 0 : index
    %10 = vector.load %arg4[%c0_7, %c0_8, %c0_9] : memref<16x24x32xf32, #tpu.memory_space<vmem>>, vector<16x24x32xf32>
    tpu.vector_store %arg4[%c0_7, %c0_8, %c0_9], %9 {strides = array<i32>} : memref<16x24x32xf32, #tpu.memory_space<vmem>>, vector<16x24x32xf32>,
    return
  }
  func.func @transform_0(%arg0: i32) -> (i32, i32, i32) {
    %c0_i32 = arith.constant 0 : i32
    %c0_i32_0 = arith.constant 0 : i32
    %c0_i32_1 = arith.constant 0 : i32
    return %arg0, %c0_i32, %c0_i32_0 : i32, i32, i32
  }
  func.func @transform_1(%arg0: i32) -> (i32, i32) {
    %c0_i32 = arith.constant 0 : i32
    %c0_i32_0 = arith.constant 0 : i32
    %c0_i32_1 = arith.constant 0 : i32
    return %c0_i32, %c0_i32_0 : i32, i32
  }
  func.func @transform_2(%arg0: i32) -> (i32, i32) {
    %c0_i32 = arith.constant 0 : i32
    %c0_i32_0 = arith.constant 0 : i32
    %c0_i32_1 = arith.constant 0 : i32
    return %c0_i32, %c0_i32_0 : i32, i32
  }
  func.func @transform_3(%arg0: i32) -> (i32, i32, i32) {
    %c0_i32 = arith.constant 0 : i32
    %c0_i32_0 = arith.constant 0 : i32
    %c0_i32_1 = arith.constant 0 : i32
    return %arg0, %c0_i32, %c0_i32_0 : i32, i32, i32
  }
}

</mosaic_0001>

<llo_original>
// kernel: custom-call
$region0: #{custom-call}
  %s0 = inlined_call_operand.vmem [shape: f32[2,16,9,32], index: 0, kind: input, shape index: {}]
  %s1 = inlined_call_operand.vmem [shape: f32[2,16,9,32], index: 1, kind: input, shape index: {}]
  %s2 = inlined_call_operand.hbm [shape: c64[2,16,9,32], index: 2, kind: output, shape index: {}]
  %s3 = scalar_lea.hbm %s2, 4608
  $region1: #{custom-call} parent=0
    #allocation0 [shape = 's32[1]{0}', space=sflag, size = 0x4, scoped, tag = 'scoped memory for custom-call']
    %4 = vsyncpa [#allocation0], 0
    %s5 = sshll.u32 %s0, 4
    %s6 = int_to_ptr.vmem [resolvable:$true] %s5
    %8 = dma.vmem_to_hbm [thread:$0]  %s6, 4608, %s2, [#allocation0]
    %9 = dma.done [#allocation0], 4608
    %10 = vsyncpa [#allocation0], 1
  $region2: #{custom-call} parent=0
    #allocation1 [shape = 's32[1]{0}', space=sflag, size = 0x4, scoped, tag = 'scoped memory for custom-call']
    %11 = vsyncpa [#allocation1], 0
    %s12 = sshll.u32 %s1, 4
    %s13 = int_to_ptr.vmem [resolvable:$true] %s12
    %15 = dma.vmem_to_hbm [thread:$0]  %s13, 4608, %s3, [#allocation1]
    %16 = dma.done [#allocation1], 4608
    %17 = vsyncpa [#allocation1], 1

// kernel: fre_embedding2.1
$region0: #{fre_embedding2.1}
  #allocation0 [shape = 'u32[]', space=smem, size = 0x4, offset = 0x4, fixed_abs, tag = 'smem constant byte address 0x4 - core index']
  #allocation1 [shape = 'u32[144,128]{1,0:T(1,128)}', space=vmem, size = 0x12000, scoped, tag = 'internal scratch']
  %s0 = inlined_call_operand.vmem [shape: bf16[32,16,4], index: 0, kind: input, shape index: {}]
  %s1 = inlined_call_operand.vmem [shape: f32[4,32], index: 1, kind: input, shape index: {}]
  %s2 = inlined_call_operand.vmem [shape: bf16[24,16], index: 2, kind: input, shape index: {}]
  %s3 = inlined_call_operand.vmem [shape: f32[32,24,32], index: 3, kind: output, shape index: {}]
  %s4 = sld [smem:[#allocation0]]
  $region45: #{fre_embedding2.1} parent=0
    _
  %s6 = ssub.s32 1, %s4
  %s7 = scalar_select 0, %s6, %s4
  loop: start=0, step=1, limit=4
  $region2: #{fre_embedding2.1} parent=0 // loop_pre_header
    _
  $region3: #{fre_embedding2.1} parent=0 // loop_header
    %s9 = sphi 0, %s13
    %p10 = scmp.ge.s32.totalorder %s9, 4
    %s19 = sphi 0, %s21
    %s22 = sphi 0, %s19
    %s23 = sphi 0, %s22
    %s39 = sphi 0, %s23
    %s43 = sphi 0, %s43
    %s45 = sphi 0, %s43
    %s46 = sphi 0, %s45
    %s60 = sphi 0, %s46
    %s64 = sphi 0, %s64
    %s66 = sphi 0, %s64
    %s67 = sphi 0, %s66
    %s81 = sphi 0, %s67
    %s87 = sphi 0, %s89
    %s90 = sphi 0, %s87
    %s91 = sphi 0, %s90
    %s107 = sphi 0, %s91
  $region4: #{fre_embedding2.1} parent=0 // loop_header_branch
    %12 = sbr.rel (%p10) target = $region8
  $region5: #{fre_embedding2.1} parent=0 // loop_body
    %s14 = ssub.s32 %s9, 1
    %s15 = ssub.s32 %s9, 2
    %s16 = sadd.s32 %s9, 1
    %s17 = ssub.s32 %s9, %s16
    %p18 = scmp.eq.s32.totalorder %s17, 0
    %s20 = sadd.s32 %s19, 1
    %s21 = scalar_select %p18, %s19, %s20
    %p24 = pneg %p18
    %p25 = scmp.eq.s32.totalorder %s9, 1
    %p26 = por %p24, %p25
    %p27 = scmp.ne.s32.totalorder %s19, %s22
    %p28 = scmp.eq.s32.totalorder %s9, 0
    %p29 = por %p27, %p28
    %p30 = scmp.ne.s32.totalorder %s19, %s22
    %p31 = scmp.eq.s32.totalorder %s14, 1
    %p32 = por %p30, %p31
    %p33 = scmp.ne.s32.totalorder %s22, %s23
    %p34 = scmp.eq.s32.totalorder %s14, 0
    %p35 = por %p33, %p34
    %p36 = scmp.ne.s32.totalorder %s22, %s23
    %p37 = scmp.eq.s32.totalorder %s15, 1
    %p38 = por %p36, %p37
    %p40 = scmp.ne.s32.totalorder %s23, %s39
    %p41 = scmp.eq.s32.totalorder %s15, 0
    %p42 = por %p40, %p41
    %s44 = sadd.s32 %s43, 1
    %p47 = scmp.eq.s32.totalorder %s9, 1
    %p48 = scmp.ne.s32.totalorder %s43, %s45
    %p49 = scmp.eq.s32.totalorder %s9, 0
    %p50 = por %p48, %p49
    %p51 = scmp.ne.s32.totalorder %s43, %s45
    %p52 = scmp.eq.s32.totalorder %s14, 1
    %p53 = por %p51, %p52
    %p54 = scmp.ne.s32.totalorder %s45, %s46
    %p55 = scmp.eq.s32.totalorder %s14, 0
    %p56 = por %p54, %p55
    %p57 = scmp.ne.s32.totalorder %s45, %s46
    %p58 = scmp.eq.s32.totalorder %s15, 1
    %p59 = por %p57, %p58
    %p61 = scmp.ne.s32.totalorder %s46, %s60
    %p62 = scmp.eq.s32.totalorder %s15, 0
    %p63 = por %p61, %p62
    %s65 = sadd.s32 %s64, 1
    %p68 = scmp.eq.s32.totalorder %s9, 1
    %p69 = scmp.ne.s32.totalorder %s64, %s66
    %p70 = scmp.eq.s32.totalorder %s9, 0
    %p71 = por %p69, %p70
    %p72 = scmp.ne.s32.totalorder %s64, %s66
    %p73 = scmp.eq.s32.totalorder %s14, 1
    %p74 = por %p72, %p73
    %p75 = scmp.ne.s32.totalorder %s66, %s67
    %p76 = scmp.eq.s32.totalorder %s14, 0
    %p77 = por %p75, %p76
    %p78 = scmp.ne.s32.totalorder %s66, %s67
    %p79 = scmp.eq.s32.totalorder %s15, 1
    %p80 = por %p78, %p79
    %p82 = scmp.ne.s32.totalorder %s67, %s81
    %p83 = scmp.eq.s32.totalorder %s15, 0
    %p84 = por %p82, %p83
    %s85 = ssub.s32 %s9, %s16
    %p86 = scmp.eq.s32.totalorder %s85, 0
    %s88 = sadd.s32 %s87, 1
    %s89 = scalar_select %p86, %s87, %s88
    %p92 = pneg %p86
    %p93 = scmp.eq.s32.totalorder %s9, 1
    %p94 = por %p92, %p93
    %p95 = scmp.ne.s32.totalorder %s87, %s90
    %p96 = scmp.eq.s32.totalorder %s9, 0
    %p97 = por %p95, %p96
    %p98 = scmp.ne.s32.totalorder %s87, %s90
    %p99 = scmp.eq.s32.totalorder %s14, 1
    %p100 = por %p98, %p99
    %p101 = scmp.ne.s32.totalorder %s90, %s91
    %p102 = scmp.eq.s32.totalorder %s14, 0
    %p103 = por %p101, %p102
    %p104 = scmp.ne.s32.totalorder %s90, %s91
    %p105 = scmp.eq.s32.totalorder %s15, 1
    %p106 = por %p104, %p105
    %p108 = scmp.ne.s32.totalorder %s91, %s107
    %p109 = scmp.eq.s32.totalorder %s15, 0
    %p110 = por %p108, %p109
    %p111 = scmp.le.s32.totalorder 1, %s9
    %p112 = scmp.lt.s32.totalorder %s9, 3
    %p113 = pnand %p111, %p112
    %p114 = pneg %p113
    // Predicated region
    $region9: #{fre_embedding2.1} parent=5 // pred_check
      _
    $region10: #{fre_embedding2.1} parent=5 // pred_check_branch
      %116 = sbr.rel (%p113) target = $region12
    $region11: #{fre_embedding2.1} parent=5 // pred_region
      %s117 = ssub.s32 %s9, 1
      // Predicated region
      $region13: #{fre_embedding2.1} parent=11 // pred_check
        %p118 = pneg %p56
      $region14: #{fre_embedding2.1} parent=11 // pred_check_branch
        %120 = sbr.rel (%p118) target = $region16
      $region15: #{fre_embedding2.1} parent=11 // pred_region
        _
      $region16: #{fre_embedding2.1} parent=11 // pred_fallthru
        _
      // Predicated region
      $region17: #{fre_embedding2.1} parent=11 // pred_check
        %p121 = pneg %p77
      $region18: #{fre_embedding2.1} parent=11 // pred_check_branch
        %123 = sbr.rel (%p121) target = $region20
      $region19: #{fre_embedding2.1} parent=11 // pred_region
        _
      $region20: #{fre_embedding2.1} parent=11 // pred_fallthru
        _
    $region12: #{fre_embedding2.1} parent=5 // pred_fallthru
      _
    %p124 = scmp.lt.s32.totalorder %s9, 2
    // Predicated region
    $region21: #{fre_embedding2.1} parent=5 // pred_check
      %p125 = pneg %p124
    $region22: #{fre_embedding2.1} parent=5 // pred_check_branch
      %127 = sbr.rel (%p125) target = $region24
    $region23: #{fre_embedding2.1} parent=5 // pred_region
      // Predicated region
      $region25: #{fre_embedding2.1} parent=23 // pred_check
        %p128 = pneg %p29
      $region26: #{fre_embedding2.1} parent=23 // pred_check_branch
        %130 = sbr.rel (%p128) target = $region28
      $region27: #{fre_embedding2.1} parent=23 // pred_region
        %s131 = smul.u32 16, %s9
        %p132 = scmp.lt.s32.totalorder %s131, 31
        %s133 = scalar_select %p132, %s131, 31
        %s134 = smul.addr %s133, 2
        %s135 = smul.addr %s134, 4
        %s136 = scalar_lea.vmem %s0, %s135
        %s137 = smul.u32 16, %s9
      $region28: #{fre_embedding2.1} parent=23 // pred_fallthru
        _
    $region24: #{fre_embedding2.1} parent=5 // pred_fallthru
      _
    %p138 = scmp.le.s32.totalorder 1, %s9
    %p139 = scmp.lt.s32.totalorder %s9, 3
    %p140 = pnand %p138, %p139
    %p141 = pneg %p140
    // Predicated region
    $region29: #{fre_embedding2.1} parent=5 // pred_check
      _
    $region30: #{fre_embedding2.1} parent=5 // pred_check_branch
      %143 = sbr.rel (%p140) target = $region32
    $region31: #{fre_embedding2.1} parent=5 // pred_region
      %s144 = ssub.s32 %s9, 1
      %s145 = smul.u32 16, %s14
      %p146 = scmp.lt.s32.totalorder %s145, 31
      %s147 = scalar_select %p146, %s145, 31
      %s148 = smul.addr %s147, 2
      %s149 = smul.addr %s148, 4
      %s150 = scalar_lea.vmem %s0, %s149
      %p151 = pneg %p35
      %p152 = pneg %p32
      %p153 = pneg %p56
      %p154 = pneg %p53
      %p155 = pneg %p77
      %p156 = pneg %p74
      %p157 = pneg %p103
      %p158 = pneg %p100
      %s159 = smul.u32 16, %s14
      %p160 = scmp.lt.s32.totalorder %s159, 31
      %s161 = scalar_select %p160, %s159, 31
      %s162 = smul.addr %s161, 3
      %s163 = smul.addr %s162, 8
      %s164 = scalar_lea.vmem %s3, %s163
      %s165 = smul.u32 16, %s14
      %p166 = scmp.lt.s32.totalorder %s165, 31
      %s167 = scalar_select %p166, %s165, 31
      %s168 = smul.addr %s167, 2
      %s169 = smul.addr %s168, 4
      %s170 = scalar_lea.vmem %s0, %s169
      %s171 = smul.u32 16, %s14
      %s172 = smul.u32 16, %s14
      %p173 = scmp.lt.s32.totalorder %s172, 31
      %s174 = scalar_select %p173, %s172, 31
      %s175 = smul.addr %s174, 3
      %s176 = smul.addr %s175, 8
      %s177 = scalar_lea.vmem %s3, %s176
      %s178 = smul.u32 16, %s14
      %v180 = vld [vmem:[%s2] sm:$0xf]
      %v181 = vld [vmem:[%s2 + $0x4] sm:$0xf]
      %v182 = vld [vmem:[%s2 + $0x8] sm:$0xf]
      %v183 = vld [vmem:[%s170] sm:$0xf]
      %v184 = vld [vmem:[%s170 + $0x4] sm:$0xf]
      %v185 = vld [vmem:[%s170 + $0x8] sm:$0xf]
      %v186 = vld [vmem:[%s170 + $0xc] sm:$0xf]
      %v187 = vld [vmem:[%s170 + $0x10] sm:$0xf]
      %v188 = vld [vmem:[%s170 + $0x14] sm:$0xf]
      %v189 = vld [vmem:[%s170 + $0x18] sm:$0xf]
      %v190 = vld [vmem:[%s170 + $0x1c] sm:$0xf]
      %v191 = vld [vmem:[%s170 + $0x20] sm:$0xf]
      %v192 = vld [vmem:[%s170 + $0x24] sm:$0xf]
      %v193 = vld [vmem:[%s170 + $0x28] sm:$0xf]
      %v194 = vld [vmem:[%s170 + $0x2c] sm:$0xf]
      %v195 = vld [vmem:[%s170 + $0x30] sm:$0xf]
      %v196 = vld [vmem:[%s170 + $0x34] sm:$0xf]
      %v197 = vld [vmem:[%s170 + $0x38] sm:$0xf]
      %v198 = vld [vmem:[%s170 + $0x3c] sm:$0xf]
      %v199 = vld [vmem:[%s170 + $0x40] sm:$0xf]
      %v200 = vld [vmem:[%s170 + $0x44] sm:$0xf]
      %v201 = vld [vmem:[%s170 + $0x48] sm:$0xf]
      %v202 = vld [vmem:[%s170 + $0x4c] sm:$0xf]
      %v203 = vld [vmem:[%s170 + $0x50] sm:$0xf]
      %v204 = vld [vmem:[%s170 + $0x54] sm:$0xf]
      %v205 = vld [vmem:[%s170 + $0x58] sm:$0xf]
      %v206 = vld [vmem:[%s170 + $0x5c] sm:$0xf]
      %v207 = vld [vmem:[%s170 + $0x60] sm:$0xf]
      %v208 = vld [vmem:[%s170 + $0x64] sm:$0xf]
      %v209 = vld [vmem:[%s170 + $0x68] sm:$0xf]
      %v210 = vld [vmem:[%s170 + $0x6c] sm:$0xf]
      %v211 = vld [vmem:[%s170 + $0x70] sm:$0xf]
      %v212 = vld [vmem:[%s170 + $0x74] sm:$0xf]
      %v213 = vld [vmem:[%s170 + $0x78] sm:$0xf]
      %v214 = vld [vmem:[%s170 + $0x7c] sm:$0xf]
      %v218 = vunpack.c.l.b16 %v180
      %v219 = vunpack.c.l.b16 %v181
      %v220 = vunpack.c.l.b16 %v182
      %v221 = vpack.c.b16 %v219, %v218
      %v222 = vpack.c.b16 %v220, %v220
      %v225 = vunpack.c.l.b16 %v183
      %v226 = vunpack.c.l.b16 %v184
      %v227 = vpack.c.b16 %v226, %v225
      %vm229 = vcmask 130048
      %v231 = vsel %vm229, %v221, 0
      %v234 = vsel %vm229, %v222, 0
      %236 = vmatprep.subr.bf16.mxu0 0
      %237 = vmatpush1.bf16.msra.mxu0 %v227
      %238 = vmatprep.subr.bf16.mxu0 0
      %239 = vmatpush1.bf16.msra.mxu0 0
      %240 = vmatprep.subr.bf16.mxu0 0
      %241 = vmatpush1.bf16.msra.mxu0 0
      %242 = vmatprep.subr.bf16.mxu0 0
      %243 = vmatpush1.bf16.msra.mxu0 0
      %244 = vmatprep.subr.bf16.mxu0 0
      %245 = vmatpush1.bf16.msra.mxu0 0
      %246 = vmatprep.subr.bf16.mxu0 0
      %247 = vmatpush1.bf16.msra.mxu0 0
      %248 = vmatprep.subr.bf16.mxu0 0
      %249 = vmatpush1.bf16.msra.mxu0 0
      %250 = vmatprep.subr.bf16.mxu0 0
      %251 = vmatpush1.bf16.msra.mxu0 0
      %252 = vmatprep.subr.bf16.mxu0 0
      %253 = vmatpush1.bf16.msra.mxu0 0
      %254 = vmatprep.subr.bf16.mxu0 0
      %255 = vmatpush1.bf16.msra.mxu0 0
      %256 = vmatprep.subr.bf16.mxu0 0
      %257 = vmatpush1.bf16.msra.mxu0 0
      %258 = vmatprep.subr.bf16.mxu0 0
      %259 = vmatpush1.bf16.msra.mxu0 0
      %260 = vmatprep.subr.bf16.mxu0 0
      %261 = vmatpush1.bf16.msra.mxu0 0
      %262 = vmatprep.subr.bf16.mxu0 0
      %263 = vmatpush1.bf16.msra.mxu0 0
      %264 = vmatprep.subr.bf16.mxu0 0
      %265 = vmatpush1.bf16.msra.mxu0 0
      %266 = vmatprep.subr.bf16.mxu0 0
      %267 = vmatpush1.bf16.msra.mxu0 0
      %268 = vmatprep.mubr.bf16.mxu0 0
      %269 = vmatmul.mubr.bf16.gmra.mrb[0].mxu0 %v231
      %v270 = vpop.f32.mrb[0].mxu0
      %v271 = vadd.f32 0.0, %v270
      %v272 = vpop.f32.mrb[0].mxu0
      %v273 = vpop.f32.mrb[0].mxu0
      %v274 = vadd.f32 0.0, %v273
      %v275 = vpop.f32.mrb[0].mxu0
      %276 = vmatprep.mubr.bf16.mxu0 0
      %277 = vmatmul.mubr.bf16.gmra.mrb[0].mxu0 %v234
      %v278 = vpop.f32.mrb[0].mxu0
      %v279 = vadd.f32 0.0, %v278
      %v280 = vpop.f32.mrb[0].mxu0
      %v281 = vpop.f32.mrb[0].mxu0
      %v282 = vpop.f32.mrb[0].mxu0
      %283 = vdwg.mxu0
      %v286 = vunpack.c.l.b16 %v185
      %v287 = vunpack.c.l.b16 %v186
      %v288 = vpack.c.b16 %v287, %v286
      %290 = vmatprep.subr.bf16.mxu0 0
      %291 = vmatpush1.bf16.msra.mxu0 %v288
      %292 = vmatprep.subr.bf16.mxu0 0
      %293 = vmatpush1.bf16.msra.mxu0 0
      %294 = vmatprep.subr.bf16.mxu0 0
      %295 = vmatpush1.bf16.msra.mxu0 0
      %296 = vmatprep.subr.bf16.mxu0 0
      %297 = vmatpush1.bf16.msra.mxu0 0
      %298 = vmatprep.subr.bf16.mxu0 0
      %299 = vmatpush1.bf16.msra.mxu0 0
      %300 = vmatprep.subr.bf16.mxu0 0
      %301 = vmatpush1.bf16.msra.mxu0 0
      %302 = vmatprep.subr.bf16.mxu0 0
      %303 = vmatpush1.bf16.msra.mxu0 0
      %304 = vmatprep.subr.bf16.mxu0 0
      %305 = vmatpush1.bf16.msra.mxu0 0
      %306 = vmatprep.subr.bf16.mxu0 0
      %307 = vmatpush1.bf16.msra.mxu0 0
      %308 = vmatprep.subr.bf16.mxu0 0
      %309 = vmatpush1.bf16.msra.mxu0 0
      %310 = vmatprep.subr.bf16.mxu0 0
      %311 = vmatpush1.bf16.msra.mxu0 0
      %312 = vmatprep.subr.bf16.mxu0 0
      %313 = vmatpush1.bf16.msra.mxu0 0
      %314 = vmatprep.subr.bf16.mxu0 0
      %315 = vmatpush1.bf16.msra.mxu0 0
      %316 = vmatprep.subr.bf16.mxu0 0
      %317 = vmatpush1.bf16.msra.mxu0 0
      %318 = vmatprep.subr.bf16.mxu0 0
      %319 = vmatpush1.bf16.msra.mxu0 0
      %320 = vmatprep.subr.bf16.mxu0 0
      %321 = vmatpush1.bf16.msra.mxu0 0
      %322 = vmatprep.mubr.bf16.mxu0 0
      %323 = vmatmul.mubr.bf16.gmra.mrb[0].mxu0 %v231
      %v324 = vpop.f32.mrb[0].mxu0
      %v325 = vadd.f32 0.0, %v324
      %v326 = vpop.f32.mrb[0].mxu0
      %v327 = vpop.f32.mrb[0].mxu0
      %v328 = vadd.f32 0.0, %v327
      %v329 = vpop.f32.mrb[0].mxu0
      %330 = vmatprep.mubr.bf16.mxu0 0
      %331 = vmatmul.mubr.bf16.gmra.mrb[0].mxu0 %v234
      %v332 = vpop.f32.mrb[0].mxu0
      %v333 = vadd.f32 0.0, %v332
      %v334 = vpop.f32.mrb[0].mxu0
      %v335 = vpop.f32.mrb[0].mxu0
      %v336 = vpop.f32.mrb[0].mxu0
      %337 = vdwg.mxu0
      %v340 = vunpack.c.l.b16 %v187
      %v341 = vunpack.c.l.b16 %v188
      %v342 = vpack.c.b16 %v341, %v340
      %344 = vmatprep.subr.bf16.mxu0 0
      %345 = vmatpush1.bf16.msra.mxu0 %v342
      %346 = vmatprep.subr.bf16.mxu0 0
      %347 = vmatpush1.bf16.msra.mxu0 0
      %348 = vmatprep.subr.bf16.mxu0 0
      %349 = vmatpush1.bf16.msra.mxu0 0
      %350 = vmatprep.subr.bf16.mxu0 0
      %351 = vmatpush1.bf16.msra.mxu0 0
      %352 = vmatprep.subr.bf16.mxu0 0
      %353 = vmatpush1.bf16.msra.mxu0 0
      %354 = vmatprep.subr.bf16.mxu0 0
      %355 = vmatpush1.bf16.msra.mxu0 0
      %356 = vmatprep.subr.bf16.mxu0 0
      %357 = vmatpush1.bf16.msra.mxu0 0
      %358 = vmatprep.subr.bf16.mxu0 0
      %359 = vmatpush1.bf16.msra.mxu0 0
      %360 = vmatprep.subr.bf16.mxu0 0
      %361 = vmatpush1.bf16.msra.mxu0 0
      %362 = vmatprep.subr.bf16.mxu0 0
      %363 = vmatpush1.bf16.msra.mxu0 0
      %364 = vmatprep.subr.bf16.mxu0 0
      %365 = vmatpush1.bf16.msra.mxu0 0
      %366 = vmatprep.subr.bf16.mxu0 0
      %367 = vmatpush1.bf16.msra.mxu0 0
      %368 = vmatprep.subr.bf16.mxu0 0
      %369 = vmatpush1.bf16.msra.mxu0 0
      %370 = vmatprep.subr.bf16.mxu0 0
      %371 = vmatpush1.bf16.msra.mxu0 0
      %372 = vmatprep.subr.bf16.mxu0 0
      %373 = vmatpush1.bf16.msra.mxu0 0
      %374 = vmatprep.subr.bf16.mxu0 0
      %375 = vmatpush1.bf16.msra.mxu0 0
      %376 = vmatprep.mubr.bf16.mxu0 0
      %377 = vmatmul.mubr.bf16.gmra.mrb[0].mxu0 %v231
      %v378 = vpop.f32.mrb[0].mxu0
      %v379 = vadd.f32 0.0, %v378
      %v380 = vpop.f32.mrb[0].mxu0
      %v381 = vpop.f32.mrb[0].mxu0
      %v382 = vadd.f32 0.0, %v381
      %v383 = vpop.f32.mrb[0].mxu0
      %384 = vmatprep.mubr.bf16.mxu0 0
      %385 = vmatmul.mubr.bf16.gmra.mrb[0].mxu0 %v234
      %v386 = vpop.f32.mrb[0].mxu0
      %v387 = vadd.f32 0.0, %v386
      %v388 = vpop.f32.mrb[0].mxu0
      %v389 = vpop.f32.mrb[0].mxu0
      %v390 = vpop.f32.mrb[0].mxu0
      %391 = vdwg.mxu0
      %v394 = vunpack.c.l.b16 %v189
      %v395 = vunpack.c.l.b16 %v190
      %v396 = vpack.c.b16 %v395, %v394
      %398 = vmatprep.subr.bf16.mxu0 0
      %399 = vmatpush1.bf16.msra.mxu0 %v396
      %400 = vmatprep.subr.bf16.mxu0 0
      %401 = vmatpush1.bf16.msra.mxu0 0
      %402 = vmatprep.subr.bf16.mxu0 0
      %403 = vmatpush1.bf16.msra.mxu0 0
      %404 = vmatprep.subr.bf16.mxu0 0
      %405 = vmatpush1.bf16.msra.mxu0 0
      %406 = vmatprep.subr.bf16.mxu0 0
      %407 = vmatpush1.bf16.msra.mxu0 0
      %408 = vmatprep.subr.bf16.mxu0 0
      %409 = vmatpush1.bf16.msra.mxu0 0
      %410 = vmatprep.subr.bf16.mxu0 0
      %411 = vmatpush1.bf16.msra.mxu0 0
      %412 = vmatprep.subr.bf16.mxu0 0
      %413 = vmatpush1.bf16.msra.mxu0 0
      %414 = vmatprep.subr.bf16.mxu0 0
      %415 = vmatpush1.bf16.msra.mxu0 0
      %416 = vmatprep.subr.bf16.mxu0 0
      %417 = vmatpush1.bf16.msra.mxu0 0
      %418 = vmatprep.subr.bf16.mxu0 0
      %419 = vmatpush1.bf16.msra.mxu0 0
      %420 = vmatprep.subr.bf16.mxu0 0
      %421 = vmatpush1.bf16.msra.mxu0 0
      %422 = vmatprep.subr.bf16.mxu0 0
      %423 = vmatpush1.bf16.msra.mxu0 0
      %424 = vmatprep.subr.bf16.mxu0 0
      %425 = vmatpush1.bf16.msra.mxu0 0
      %426 = vmatprep.subr.bf16.mxu0 0
      %427 = vmatpush1.bf16.msra.mxu0 0
      %428 = vmatprep.subr.bf16.mxu0 0
      %429 = vmatpush1.bf16.msra.mxu0 0
      %430 = vmatprep.mubr.bf16.mxu0 0
      %431 = vmatmul.mubr.bf16.gmra.mrb[0].mxu0 %v231
      %v432 = vpop.f32.mrb[0].mxu0
      %v433 = vadd.f32 0.0, %v432
      %v434 = vpop.f32.mrb[0].mxu0
      %v435 = vpop.f32.mrb[0].mxu0
      %v436 = vadd.f32 0.0, %v435
      %v437 = vpop.f32.mrb[0].mxu0
      %438 = vmatprep.mubr.bf16.mxu0 0
      %439 = vmatmul.mubr.bf16.gmra.mrb[0].mxu0 %v234
      %v440 = vpop.f32.mrb[0].mxu0
      %v441 = vadd.f32 0.0, %v440
      %v442 = vpop.f32.mrb[0].mxu0
      %v443 = vpop.f32.mrb[0].mxu0
      %v444 = vpop.f32.mrb[0].mxu0
      %445 = vdwg.mxu0
      %v448 = vunpack.c.l.b16 %v191
      %v449 = vunpack.c.l.b16 %v192
      %v450 = vpack.c.b16 %v449, %v448
      %452 = vmatprep.subr.bf16.mxu0 0
      %453 = vmatpush1.bf16.msra.mxu0 %v450
      %454 = vmatprep.subr.bf16.mxu0 0
      %455 = vmatpush1.bf16.msra.mxu0 0
      %456 = vmatprep.subr.bf16.mxu0 0
      %457 = vmatpush1.bf16.msra.mxu0 0
      %458 = vmatprep.subr.bf16.mxu0 0
      %459 = vmatpush1.bf16.msra.mxu0 0
      %460 = vmatprep.subr.bf16.mxu0 0
      %461 = vmatpush1.bf16.msra.mxu0 0
      %462 = vmatprep.subr.bf16.mxu0 0
      %463 = vmatpush1.bf16.msra.mxu0 0
      %464 = vmatprep.subr.bf16.mxu0 0
      %465 = vmatpush1.bf16.msra.mxu0 0
      %466 = vmatprep.subr.bf16.mxu0 0
      %467 = vmatpush1.bf16.msra.mxu0 0
      %468 = vmatprep.subr.bf16.mxu0 0
      %469 = vmatpush1.bf16.msra.mxu0 0
      %470 = vmatprep.subr.bf16.mxu0 0
      %471 = vmatpush1.bf16.msra.mxu0 0
      %472 = vmatprep.subr.bf16.mxu0 0
      %473 = vmatpush1.bf16.msra.mxu0 0
      %474 = vmatprep.subr.bf16.mxu0 0
      %475 = vmatpush1.bf16.msra.mxu0 0
      %476 = vmatprep.subr.bf16.mxu0 0
      %477 = vmatpush1.bf16.msra.mxu0 0
      %478 = vmatprep.subr.bf16.mxu0 0
      %479 = vmatpush1.bf16.msra.mxu0 0
      %480 = vmatprep.subr.bf16.mxu0 0
      %481 = vmatpush1.bf16.msra.mxu0 0
      %482 = vmatprep.subr.bf16.mxu0 0
      %483 = vmatpush1.bf16.msra.mxu0 0
      %484 = vmatprep.mubr.bf16.mxu0 0
      %485 = vmatmul.mubr.bf16.gmra.mrb[0].mxu0 %v231
      %v486 = vpop.f32.mrb[0].mxu0
      %v487 = vadd.f32 0.0, %v486
      %v488 = vpop.f32.mrb[0].mxu0
      %v489 = vpop.f32.mrb[0].mxu0
      %v490 = vadd.f32 0.0, %v489
      %v491 = vpop.f32.mrb[0].mxu0
      %492 = vmatprep.mubr.bf16.mxu0 0
      %493 = vmatmul.mubr.bf16.gmra.mrb[0].mxu0 %v234
      %v494 = vpop.f32.mrb[0].mxu0
      %v495 = vadd.f32 0.0, %v494
      %v496 = vpop.f32.mrb[0].mxu0
      %v497 = vpop.f32.mrb[0].mxu0
      %v498 = vpop.f32.mrb[0].mxu0
      %499 = vdwg.mxu0
      %v502 = vunpack.c.l.b16 %v193
      %v503 = vunpack.c.l.b16 %v194
      %v504 = vpack.c.b16 %v503, %v502
      %506 = vmatprep.subr.bf16.mxu0 0
      %507 = vmatpush1.bf16.msra.mxu0 %v504
      %508 = vmatprep.subr.bf16.mxu0 0
      %509 = vmatpush1.bf16.msra.mxu0 0
      %510 = vmatprep.subr.bf16.mxu0 0
      %511 = vmatpush1.bf16.msra.mxu0 0
      %512 = vmatprep.subr.bf16.mxu0 0
      %513 = vmatpush1.bf16.msra.mxu0 0
      %514 = vmatprep.subr.bf16.mxu0 0
      %515 = vmatpush1.bf16.msra.mxu0 0
      %516 = vmatprep.subr.bf16.mxu0 0
      %517 = vmatpush1.bf16.msra.mxu0 0
      %518 = vmatprep.subr.bf16.mxu0 0
      %519 = vmatpush1.bf16.msra.mxu0 0
      %520 = vmatprep.subr.bf16.mxu0 0
      %521 = vmatpush1.bf16.msra.mxu0 0
      %522 = vmatprep.subr.bf16.mxu0 0
      %523 = vmatpush1.bf16.msra.mxu0 0
      %524 = vmatprep.subr.bf16.mxu0 0
      %525 = vmatpush1.bf16.msra.mxu0 0
      %526 = vmatprep.subr.bf16.mxu0 0
      %527 = vmatpush1.bf16.msra.mxu0 0
      %528 = vmatprep.subr.bf16.mxu0 0
      %529 = vmatpush1.bf16.msra.mxu0 0
      %530 = vmatprep.subr.bf16.mxu0 0
      %531 = vmatpush1.bf16.msra.mxu0 0
      %532 = vmatprep.subr.bf16.mxu0 0
      %533 = vmatpush1.bf16.msra.mxu0 0
      %534 = vmatprep.subr.bf16.mxu0 0
      %535 = vmatpush1.bf16.msra.mxu0 0
      %536 = vmatprep.subr.bf16.mxu0 0
      %537 = vmatpush1.bf16.msra.mxu0 0
      %538 = vmatprep.mubr.bf16.mxu0 0
      %539 = vmatmul.mubr.bf16.gmra.mrb[0].mxu0 %v231
      %v540 = vpop.f32.mrb[0].mxu0
      %v541 = vadd.f32 0.0, %v540
      %v542 = vpop.f32.mrb[0].mxu0
      %v543 = vpop.f32.mrb[0].mxu0
      %v544 = vadd.f32 0.0, %v543
      %v545 = vpop.f32.mrb[0].mxu0
      %546 = vmatprep.mubr.bf16.mxu0 0
      %547 = vmatmul.mubr.bf16.gmra.mrb[0].mxu0 %v234
      %v548 = vpop.f32.mrb[0].mxu0
      %v549 = vadd.f32 0.0, %v548
      %v550 = vpop.f32.mrb[0].mxu0
      %v551 = vpop.f32.mrb[0].mxu0
      %v552 = vpop.f32.mrb[0].mxu0
      %553 = vdwg.mxu0
      %v556 = vunpack.c.l.b16 %v195
      %v557 = vunpack.c.l.b16 %v196
      %v558 = vpack.c.b16 %v557, %v556
      %560 = vmatprep.subr.bf16.mxu0 0
      %561 = vmatpush1.bf16.msra.mxu0 %v558
      %562 = vmatprep.subr.bf16.mxu0 0
      %563 = vmatpush1.bf16.msra.mxu0 0
      %564 = vmatprep.subr.bf16.mxu0 0
      %565 = vmatpush1.bf16.msra.mxu0 0
      %566 = vmatprep.subr.bf16.mxu0 0
      %567 = vmatpush1.bf16.msra.mxu0 0
      %568 = vmatprep.subr.bf16.mxu0 0
      %569 = vmatpush1.bf16.msra.mxu0 0
      %570 = vmatprep.subr.bf16.mxu0 0
      %571 = vmatpush1.bf16.msra.mxu0 0
      %572 = vmatprep.subr.bf16.mxu0 0
      %573 = vmatpush1.bf16.msra.mxu0 0
      %574 = vmatprep.subr.bf16.mxu0 0
      %575 = vmatpush1.bf16.msra.mxu0 0
      %576 = vmatprep.subr.bf16.mxu0 0
      %577 = vmatpush1.bf16.msra.mxu0 0
      %578 = vmatprep.subr.bf16.mxu0 0
      %579 = vmatpush1.bf16.msra.mxu0 0
      %580 = vmatprep.subr.bf16.mxu0 0
      %581 = vmatpush1.bf16.msra.mxu0 0
      %582 = vmatprep.subr.bf16.mxu0 0
      %583 = vmatpush1.bf16.msra.mxu0 0
      %584 = vmatprep.subr.bf16.mxu0 0
      %585 = vmatpush1.bf16.msra.mxu0 0
      %586 = vmatprep.subr.bf16.mxu0 0
      %587 = vmatpush1.bf16.msra.mxu0 0
      %588 = vmatprep.subr.bf16.mxu0 0
      %589 = vmatpush1.bf16.msra.mxu0 0
      %590 = vmatprep.subr.bf16.mxu0 0
      %591 = vmatpush1.bf16.msra.mxu0 0
      %592 = vmatprep.mubr.bf16.mxu0 0
      %593 = vmatmul.mubr.bf16.gmra.mrb[0].mxu0 %v231
      %v594 = vpop.f32.mrb[0].mxu0
      %v595 = vadd.f32 0.0, %v594
      %v596 = vpop.f32.mrb[0].mxu0
      %v597 = vpop.f32.mrb[0].mxu0
      %v598 = vadd.f32 0.0, %v597
      %v599 = vpop.f32.mrb[0].mxu0
      %600 = vmatprep.mubr.bf16.mxu0 0
      %601 = vmatmul.mubr.bf16.gmra.mrb[0].mxu0 %v234
      %v602 = vpop.f32.mrb[0].mxu0
      %v603 = vadd.f32 0.0, %v602
      %v604 = vpop.f32.mrb[0].mxu0
      %v605 = vpop.f32.mrb[0].mxu0
      %v606 = vpop.f32.mrb[0].mxu0
      %607 = vdwg.mxu0
      %v610 = vunpack.c.l.b16 %v197
      %v611 = vunpack.c.l.b16 %v198
      %v612 = vpack.c.b16 %v611, %v610
      %614 = vmatprep.subr.bf16.mxu0 0
      %615 = vmatpush1.bf16.msra.mxu0 %v612
      %616 = vmatprep.subr.bf16.mxu0 0
      %617 = vmatpush1.bf16.msra.mxu0 0
      %618 = vmatprep.subr.bf16.mxu0 0
      %619 = vmatpush1.bf16.msra.mxu0 0
      %620 = vmatprep.subr.bf16.mxu0 0
      %621 = vmatpush1.bf16.msra.mxu0 0
      %622 = vmatprep.subr.bf16.mxu0 0
      %623 = vmatpush1.bf16.msra.mxu0 0
      %624 = vmatprep.subr.bf16.mxu0 0
      %625 = vmatpush1.bf16.msra.mxu0 0
      %626 = vmatprep.subr.bf16.mxu0 0
      %627 = vmatpush1.bf16.msra.mxu0 0
      %628 = vmatprep.subr.bf16.mxu0 0
      %629 = vmatpush1.bf16.msra.mxu0 0
      %630 = vmatprep.subr.bf16.mxu0 0
      %631 = vmatpush1.bf16.msra.mxu0 0
      %632 = vmatprep.subr.bf16.mxu0 0
      %633 = vmatpush1.bf16.msra.mxu0 0
      %634 = vmatprep.subr.bf16.mxu0 0
      %635 = vmatpush1.bf16.msra.mxu0 0
      %636 = vmatprep.subr.bf16.mxu0 0
      %637 = vmatpush1.bf16.msra.mxu0 0
      %638 = vmatprep.subr.bf16.mxu0 0
      %639 = vmatpush1.bf16.msra.mxu0 0
      %640 = vmatprep.subr.bf16.mxu0 0
      %641 = vmatpush1.bf16.msra.mxu0 0
      %642 = vmatprep.subr.bf16.mxu0 0
      %643 = vmatpush1.bf16.msra.mxu0 0
      %644 = vmatprep.subr.bf16.mxu0 0
      %645 = vmatpush1.bf16.msra.mxu0 0
      %646 = vmatprep.mubr.bf16.mxu0 0
      %647 = vmatmul.mubr.bf16.gmra.mrb[0].mxu0 %v231
      %v648 = vpop.f32.mrb[0].mxu0
      %v649 = vadd.f32 0.0, %v648
      %v650 = vpop.f32.mrb[0].mxu0
      %v651 = vpop.f32.mrb[0].mxu0
      %v652 = vadd.f32 0.0, %v651
      %v653 = vpop.f32.mrb[0].mxu0
      %654 = vmatprep.mubr.bf16.mxu0 0
      %655 = vmatmul.mubr.bf16.gmra.mrb[0].mxu0 %v234
      %v656 = vpop.f32.mrb[0].mxu0
      %v657 = vadd.f32 0.0, %v656
      %v658 = vpop.f32.mrb[0].mxu0
      %v659 = vpop.f32.mrb[0].mxu0
      %v660 = vpop.f32.mrb[0].mxu0
      %661 = vdwg.mxu0
      %v664 = vunpack.c.l.b16 %v199
      %v665 = vunpack.c.l.b16 %v200
      %v666 = vpack.c.b16 %v665, %v664
      %668 = vmatprep.subr.bf16.mxu0 0
      %669 = vmatpush1.bf16.msra.mxu0 %v666
      %670 = vmatprep.subr.bf16.mxu0 0
      %671 = vmatpush1.bf16.msra.mxu0 0
      %672 = vmatprep.subr.bf16.mxu0 0
      %673 = vmatpush1.bf16.msra.mxu0 0
      %674 = vmatprep.subr.bf16.mxu0 0
      %675 = vmatpush1.bf16.msra.mxu0 0
      %676 = vmatprep.subr.bf16.mxu0 0
      %677 = vmatpush1.bf16.msra.mxu0 0
      %678 = vmatprep.subr.bf16.mxu0 0
      %679 = vmatpush1.bf16.msra.mxu0 0
      %680 = vmatprep.subr.bf16.mxu0 0
      %681 = vmatpush1.bf16.msra.mxu0 0
      %682 = vmatprep.subr.bf16.mxu0 0
      %683 = vmatpush1.bf16.msra.mxu0 0
      %684 = vmatprep.subr.bf16.mxu0 0
      %685 = vmatpush1.bf16.msra.mxu0 0
      %686 = vmatprep.subr.bf16.mxu0 0
      %687 = vmatpush1.bf16.msra.mxu0 0
      %688 = vmatprep.subr.bf16.mxu0 0
      %689 = vmatpush1.bf16.msra.mxu0 0
      %690 = vmatprep.subr.bf16.mxu0 0
      %691 = vmatpush1.bf16.msra.mxu0 0
      %692 = vmatprep.subr.bf16.mxu0 0
      %693 = vmatpush1.bf16.msra.mxu0 0
      %694 = vmatprep.subr.bf16.mxu0 0
      %695 = vmatpush1.bf16.msra.mxu0 0
      %696 = vmatprep.subr.bf16.mxu0 0
      %697 = vmatpush1.bf16.msra.mxu0 0
      %698 = vmatprep.subr.bf16.mxu0 0
      %699 = vmatpush1.bf16.msra.mxu0 0
      %700 = vmatprep.mubr.bf16.mxu0 0
      %701 = vmatmul.mubr.bf16.gmra.mrb[0].mxu0 %v231
      %v702 = vpop.f32.mrb[0].mxu0
      %v703 = vadd.f32 0.0, %v702
      %v704 = vpop.f32.mrb[0].mxu0
      %v705 = vpop.f32.mrb[0].mxu0
      %v706 = vadd.f32 0.0, %v705
      %v707 = vpop.f32.mrb[0].mxu0
      %708 = vmatprep.mubr.bf16.mxu0 0
      %709 = vmatmul.mubr.bf16.gmra.mrb[0].mxu0 %v234
      %v710 = vpop.f32.mrb[0].mxu0
      %v711 = vadd.f32 0.0, %v710
      %v712 = vpop.f32.mrb[0].mxu0
      %v713 = vpop.f32.mrb[0].mxu0
      %v714 = vpop.f32.mrb[0].mxu0
      %715 = vdwg.mxu0
      %v718 = vunpack.c.l.b16 %v201
      %v719 = vunpack.c.l.b16 %v202
      %v720 = vpack.c.b16 %v719, %v718
      %722 = vmatprep.subr.bf16.mxu0 0
      %723 = vmatpush1.bf16.msra.mxu0 %v720
      %724 = vmatprep.subr.bf16.mxu0 0
      %725 = vmatpush1.bf16.msra.mxu0 0
      %726 = vmatprep.subr.bf16.mxu0 0
      %727 = vmatpush1.bf16.msra.mxu0 0
      %728 = vmatprep.subr.bf16.mxu0 0
      %729 = vmatpush1.bf16.msra.mxu0 0
      %730 = vmatprep.subr.bf16.mxu0 0
      %731 = vmatpush1.bf16.msra.mxu0 0
      %732 = vmatprep.subr.bf16.mxu0 0
      %733 = vmatpush1.bf16.msra.mxu0 0
      %734 = vmatprep.subr.bf16.mxu0 0
      %735 = vmatpush1.bf16.msra.mxu0 0
      %736 = vmatprep.subr.bf16.mxu0 0
      %737 = vmatpush1.bf16.msra.mxu0 0
      %738 = vmatprep.subr.bf16.mxu0 0
      %739 = vmatpush1.bf16.msra.mxu0 0
      %740 = vmatprep.subr.bf16.mxu0 0
      %741 = vmatpush1.bf16.msra.mxu0 0
      %742 = vmatprep.subr.bf16.mxu0 0
      %743 = vmatpush1.bf16.msra.mxu0 0
      %744 = vmatprep.subr.bf16.mxu0 0
      %745 = vmatpush1.bf16.msra.mxu0 0
      %746 = vmatprep.subr.bf16.mxu0 0
      %747 = vmatpush1.bf16.msra.mxu0 0
      %748 = vmatprep.subr.bf16.mxu0 0
      %749 = vmatpush1.bf16.msra.mxu0 0
      %750 = vmatprep.subr.bf16.mxu0 0
      %751 = vmatpush1.bf16.msra.mxu0 0
      %752 = vmatprep.subr.bf16.mxu0 0
      %753 = vmatpush1.bf16.msra.mxu0 0
      %754 = vmatprep.mubr.bf16.mxu0 0
      %755 = vmatmul.mubr.bf16.gmra.mrb[0].mxu0 %v231
      %v756 = vpop.f32.mrb[0].mxu0
      %v757 = vadd.f32 0.0, %v756
      %v758 = vpop.f32.mrb[0].mxu0
      %v759 = vpop.f32.mrb[0].mxu0
      %v760 = vadd.f32 0.0, %v759
      %v761 = vpop.f32.mrb[0].mxu0
      %762 = vmatprep.mubr.bf16.mxu0 0
      %763 = vmatmul.mubr.bf16.gmra.mrb[0].mxu0 %v234
      %v764 = vpop.f32.mrb[0].mxu0
      %v765 = vadd.f32 0.0, %v764
      %v766 = vpop.f32.mrb[0].mxu0
      %v767 = vpop.f32.mrb[0].mxu0
      %v768 = vpop.f32.mrb[0].mxu0
      %769 = vdwg.mxu0
      %v772 = vunpack.c.l.b16 %v203
      %v773 = vunpack.c.l.b16 %v204
      %v774 = vpack.c.b16 %v773, %v772
      %776 = vmatprep.subr.bf16.mxu0 0
      %777 = vmatpush1.bf16.msra.mxu0 %v774
      %778 = vmatprep.subr.bf16.mxu0 0
      %779 = vmatpush1.bf16.msra.mxu0 0
      %780 = vmatprep.subr.bf16.mxu0 0
      %781 = vmatpush1.bf16.msra.mxu0 0
      %782 = vmatprep.subr.bf16.mxu0 0
      %783 = vmatpush1.bf16.msra.mxu0 0
      %784 = vmatprep.subr.bf16.mxu0 0
      %785 = vmatpush1.bf16.msra.mxu0 0
      %786 = vmatprep.subr.bf16.mxu0 0
      %787 = vmatpush1.bf16.msra.mxu0 0
      %788 = vmatprep.subr.bf16.mxu0 0
      %789 = vmatpush1.bf16.msra.mxu0 0
      %790 = vmatprep.subr.bf16.mxu0 0
      %791 = vmatpush1.bf16.msra.mxu0 0
      %792 = vmatprep.subr.bf16.mxu0 0
      %793 = vmatpush1.bf16.msra.mxu0 0
      %794 = vmatprep.subr.bf16.mxu0 0
      %795 = vmatpush1.bf16.msra.mxu0 0
      %796 = vmatprep.subr.bf16.mxu0 0
      %797 = vmatpush1.bf16.msra.mxu0 0
      %798 = vmatprep.subr.bf16.mxu0 0
      %799 = vmatpush1.bf16.msra.mxu0 0
      %800 = vmatprep.subr.bf16.mxu0 0
      %801 = vmatpush1.bf16.msra.mxu0 0
      %802 = vmatprep.subr.bf16.mxu0 0
      %803 = vmatpush1.bf16.msra.mxu0 0
      %804 = vmatprep.subr.bf16.mxu0 0
      %805 = vmatpush1.bf16.msra.mxu0 0
      %806 = vmatprep.subr.bf16.mxu0 0
      %807 = vmatpush1.bf16.msra.mxu0 0
      %808 = vmatprep.mubr.bf16.mxu0 0
      %809 = vmatmul.mubr.bf16.gmra.mrb[0].mxu0 %v231
      %v810 = vpop.f32.mrb[0].mxu0
      %v811 = vadd.f32 0.0, %v810
      %v812 = vpop.f32.mrb[0].mxu0
      %v813 = vpop.f32.mrb[0].mxu0
      %v814 = vadd.f32 0.0, %v813
      %v815 = vpop.f32.mrb[0].mxu0
      %816 = vmatprep.mubr.bf16.mxu0 0
      %817 = vmatmul.mubr.bf16.gmra.mrb[0].mxu0 %v234
      %v818 = vpop.f32.mrb[0].mxu0
      %v819 = vadd.f32 0.0, %v818
      %v820 = vpop.f32.mrb[0].mxu0
      %v821 = vpop.f32.mrb[0].mxu0
      %v822 = vpop.f32.mrb[0].mxu0
      %823 = vdwg.mxu0
      %v826 = vunpack.c.l.b16 %v205
      %v827 = vunpack.c.l.b16 %v206
      %v828 = vpack.c.b16 %v827, %v826
      %830 = vmatprep.subr.bf16.mxu0 0
      %831 = vmatpush1.bf16.msra.mxu0 %v828
      %832 = vmatprep.subr.bf16.mxu0 0
      %833 = vmatpush1.bf16.msra.mxu0 0
      %834 = vmatprep.subr.bf16.mxu0 0
      %835 = vmatpush1.bf16.msra.mxu0 0
      %836 = vmatprep.subr.bf16.mxu0 0
      %837 = vmatpush1.bf16.msra.mxu0 0
      %838 = vmatprep.subr.bf16.mxu0 0
      %839 = vmatpush1.bf16.msra.mxu0 0
      %840 = vmatprep.subr.bf16.mxu0 0
      %841 = vmatpush1.bf16.msra.mxu0 0
      %842 = vmatprep.subr.bf16.mxu0 0
      %843 = vmatpush1.bf16.msra.mxu0 0
      %844 = vmatprep.subr.bf16.mxu0 0
      %845 = vmatpush1.bf16.msra.mxu0 0
      %846 = vmatprep.subr.bf16.mxu0 0
      %847 = vmatpush1.bf16.msra.mxu0 0
      %848 = vmatprep.subr.bf16.mxu0 0
      %849 = vmatpush1.bf16.msra.mxu0 0
      %850 = vmatprep.subr.bf16.mxu0 0
      %851 = vmatpush1.bf16.msra.mxu0 0
      %852 = vmatprep.subr.bf16.mxu0 0
      %853 = vmatpush1.bf16.msra.mxu0 0
      %854 = vmatprep.subr.bf16.mxu0 0
      %855 = vmatpush1.bf16.msra.mxu0 0
      %856 = vmatprep.subr.bf16.mxu0 0
      %857 = vmatpush1.bf16.msra.mxu0 0
      %858 = vmatprep.subr.bf16.mxu0 0
      %859 = vmatpush1.bf16.msra.mxu0 0
      %860 = vmatprep.subr.bf16.mxu0 0
      %861 = vmatpush1.bf16.msra.mxu0 0
      %862 = vmatprep.mubr.bf16.mxu0 0
      %863 = vmatmul.mubr.bf16.gmra.mrb[0].mxu0 %v231
      %v864 = vpop.f32.mrb[0].mxu0
      %v865 = vadd.f32 0.0, %v864
      %v866 = vpop.f32.mrb[0].mxu0
      %v867 = vpop.f32.mrb[0].mxu0
      %v868 = vadd.f32 0.0, %v867
      %v869 = vpop.f32.mrb[0].mxu0
      %870 = vmatprep.mubr.bf16.mxu0 0
      %871 = vmatmul.mubr.bf16.gmra.mrb[0].mxu0 %v234
      %v872 = vpop.f32.mrb[0].mxu0
      %v873 = vadd.f32 0.0, %v872
      %v874 = vpop.f32.mrb[0].mxu0
      %v875 = vpop.f32.mrb[0].mxu0
      %v876 = vpop.f32.mrb[0].mxu0
      %877 = vdwg.mxu0
      %v880 = vunpack.c.l.b16 %v207
      %v881 = vunpack.c.l.b16 %v208
      %v882 = vpack.c.b16 %v881, %v880
      %884 = vmatprep.subr.bf16.mxu0 0
      %885 = vmatpush1.bf16.msra.mxu0 %v882
      %886 = vmatprep.subr.bf16.mxu0 0
      %887 = vmatpush1.bf16.msra.mxu0 0
      %888 = vmatprep.subr.bf16.mxu0 0
      %889 = vmatpush1.bf16.msra.mxu0 0
      %890 = vmatprep.subr.bf16.mxu0 0
      %891 = vmatpush1.bf16.msra.mxu0 0
      %892 = vmatprep.subr.bf16.mxu0 0
      %893 = vmatpush1.bf16.msra.mxu0 0
      %894 = vmatprep.subr.bf16.mxu0 0
      %895 = vmatpush1.bf16.msra.mxu0 0
      %896 = vmatprep.subr.bf16.mxu0 0
      %897 = vmatpush1.bf16.msra.mxu0 0
      %898 = vmatprep.subr.bf16.mxu0 0
      %899 = vmatpush1.bf16.msra.mxu0 0
      %900 = vmatprep.subr.bf16.mxu0 0
      %901 = vmatpush1.bf16.msra.mxu0 0
      %902 = vmatprep.subr.bf16.mxu0 0
      %903 = vmatpush1.bf16.msra.mxu0 0
      %904 = vmatprep.subr.bf16.mxu0 0
      %905 = vmatpush1.bf16.msra.mxu0 0
      %906 = vmatprep.subr.bf16.mxu0 0
      %907 = vmatpush1.bf16.msra.mxu0 0
      %908 = vmatprep.subr.bf16.mxu0 0
      %909 = vmatpush1.bf16.msra.mxu0 0
      %910 = vmatprep.subr.bf16.mxu0 0
      %911 = vmatpush1.bf16.msra.mxu0 0
      %912 = vmatprep.subr.bf16.mxu0 0
      %913 = vmatpush1.bf16.msra.mxu0 0
      %914 = vmatprep.subr.bf16.mxu0 0
      %915 = vmatpush1.bf16.msra.mxu0 0
      %916 = vmatprep.mubr.bf16.mxu0 0
      %917 = vmatmul.mubr.bf16.gmra.mrb[0].mxu0 %v231
      %v918 = vpop.f32.mrb[0].mxu0
      %v919 = vadd.f32 0.0, %v918
      %v920 = vpop.f32.mrb[0].mxu0
      %v921 = vpop.f32.mrb[0].mxu0
      %v922 = vadd.f32 0.0, %v921
      %v923 = vpop.f32.mrb[0].mxu0
      %924 = vmatprep.mubr.bf16.mxu0 0
      %925 = vmatmul.mubr.bf16.gmra.mrb[0].mxu0 %v234
      %v926 = vpop.f32.mrb[0].mxu0
      %v927 = vadd.f32 0.0, %v926
      %v928 = vpop.f32.mrb[0].mxu0
      %v929 = vpop.f32.mrb[0].mxu0
      %v930 = vpop.f32.mrb[0].mxu0
      %931 = vdwg.mxu0
      %v934 = vunpack.c.l.b16 %v209
      %v935 = vunpack.c.l.b16 %v210
      %v936 = vpack.c.b16 %v935, %v934
      %938 = vmatprep.subr.bf16.mxu0 0
      %939 = vmatpush1.bf16.msra.mxu0 %v936
      %940 = vmatprep.subr.bf16.mxu0 0
      %941 = vmatpush1.bf16.msra.mxu0 0
      %942 = vmatprep.subr.bf16.mxu0 0
      %943 = vmatpush1.bf16.msra.mxu0 0
      %944 = vmatprep.subr.bf16.mxu0 0
      %945 = vmatpush1.bf16.msra.mxu0 0
      %946 = vmatprep.subr.bf16.mxu0 0
      %947 = vmatpush1.bf16.msra.mxu0 0
      %948 = vmatprep.subr.bf16.mxu0 0
      %949 = vmatpush1.bf16.msra.mxu0 0
      %950 = vmatprep.subr.bf16.mxu0 0
      %951 = vmatpush1.bf16.msra.mxu0 0
      %952 = vmatprep.subr.bf16.mxu0 0
      %953 = vmatpush1.bf16.msra.mxu0 0
      %954 = vmatprep.subr.bf16.mxu0 0
      %955 = vmatpush1.bf16.msra.mxu0 0
      %956 = vmatprep.subr.bf16.mxu0 0
      %957 = vmatpush1.bf16.msra.mxu0 0
      %958 = vmatprep.subr.bf16.mxu0 0
      %959 = vmatpush1.bf16.msra.mxu0 0
      %960 = vmatprep.subr.bf16.mxu0 0
      %961 = vmatpush1.bf16.msra.mxu0 0
      %962 = vmatprep.subr.bf16.mxu0 0
      %963 = vmatpush1.bf16.msra.mxu0 0
      %964 = vmatprep.subr.bf16.mxu0 0
      %965 = vmatpush1.bf16.msra.mxu0 0
      %966 = vmatprep.subr.bf16.mxu0 0
      %967 = vmatpush1.bf16.msra.mxu0 0
      %968 = vmatprep.subr.bf16.mxu0 0
      %969 = vmatpush1.bf16.msra.mxu0 0
      %970 = vmatprep.mubr.bf16.mxu0 0
      %971 = vmatmul.mubr.bf16.gmra.mrb[0].mxu0 %v231
      %v972 = vpop.f32.mrb[0].mxu0
      %v973 = vadd.f32 0.0, %v972
      %v974 = vpop.f32.mrb[0].mxu0
      %v975 = vpop.f32.mrb[0].mxu0
      %v976 = vadd.f32 0.0, %v975
      %v977 = vpop.f32.mrb[0].mxu0
      %978 = vmatprep.mubr.bf16.mxu0 0
      %979 = vmatmul.mubr.bf16.gmra.mrb[0].mxu0 %v234
      %v980 = vpop.f32.mrb[0].mxu0
      %v981 = vadd.f32 0.0, %v980
      %v982 = vpop.f32.mrb[0].mxu0
      %v983 = vpop.f32.mrb[0].mxu0
      %v984 = vpop.f32.mrb[0].mxu0
      %985 = vdwg.mxu0
      %v988 = vunpack.c.l.b16 %v211
      %v989 = vunpack.c.l.b16 %v212
      %v990 = vpack.c.b16 %v989, %v988
      %992 = vmatprep.subr.bf16.mxu0 0
      %993 = vmatpush1.bf16.msra.mxu0 %v990
      %994 = vmatprep.subr.bf16.mxu0 0
      %995 = vmatpush1.bf16.msra.mxu0 0
      %996 = vmatprep.subr.bf16.mxu0 0
      %997 = vmatpush1.bf16.msra.mxu0 0
      %998 = vmatprep.subr.bf16.mxu0 0
      %999 = vmatpush1.bf16.msra.mxu0 0
      %1000 = vmatprep.subr.bf16.mxu0 0
      %1001 = vmatpush1.bf16.msra.mxu0 0
      %1002 = vmatprep.subr.bf16.mxu0 0
      %1003 = vmatpush1.bf16.msra.mxu0 0
      %1004 = vmatprep.subr.bf16.mxu0 0
      %1005 = vmatpush1.bf16.msra.mxu0 0
      %1006 = vmatprep.subr.bf16.mxu0 0
      %1007 = vmatpush1.bf16.msra.mxu0 0
      %1008 = vmatprep.subr.bf16.mxu0 0
      %1009 = vmatpush1.bf16.msra.mxu0 0
      %1010 = vmatprep.subr.bf16.mxu0 0
      %1011 = vmatpush1.bf16.msra.mxu0 0
      %1012 = vmatprep.subr.bf16.mxu0 0
      %1013 = vmatpush1.bf16.msra.mxu0 0
      %1014 = vmatprep.subr.bf16.mxu0 0
      %1015 = vmatpush1.bf16.msra.mxu0 0
      %1016 = vmatprep.subr.bf16.mxu0 0
      %1017 = vmatpush1.bf16.msra.mxu0 0
      %1018 = vmatprep.subr.bf16.mxu0 0
      %1019 = vmatpush1.bf16.msra.mxu0 0
      %1020 = vmatprep.subr.bf16.mxu0 0
      %1021 = vmatpush1.bf16.msra.mxu0 0
      %1022 = vmatprep.subr.bf16.mxu0 0
      %1023 = vmatpush1.bf16.msra.mxu0 0
      %1024 = vmatprep.mubr.bf16.mxu0 0
      %1025 = vmatmul.mubr.bf16.gmra.mrb[0].mxu0 %v231
      %v1026 = vpop.f32.mrb[0].mxu0
      %v1027 = vadd.f32 0.0, %v1026
      %v1028 = vpop.f32.mrb[0].mxu0
      %v1029 = vpop.f32.mrb[0].mxu0
      %v1030 = vadd.f32 0.0, %v1029
      %v1031 = vpop.f32.mrb[0].mxu0
      %1032 = vmatprep.mubr.bf16.mxu0 0
      %1033 = vmatmul.mubr.bf16.gmra.mrb[0].mxu0 %v234
      %v1034 = vpop.f32.mrb[0].mxu0
      %v1035 = vadd.f32 0.0, %v1034
      %v1036 = vpop.f32.mrb[0].mxu0
      %v1037 = vpop.f32.mrb[0].mxu0
      %v1038 = vpop.f32.mrb[0].mxu0
      %1039 = vdwg.mxu0
      %v1042 = vunpack.c.l.b16 %v213
      %v1043 = vunpack.c.l.b16 %v214
      %v1044 = vpack.c.b16 %v1043, %v1042
      %1046 = vmatprep.subr.bf16.mxu0 0
      %1047 = vmatpush1.bf16.msra.mxu0 %v1044
      %1048 = vmatprep.subr.bf16.mxu0 0
      %1049 = vmatpush1.bf16.msra.mxu0 0
      %1050 = vmatprep.subr.bf16.mxu0 0
      %1051 = vmatpush1.bf16.msra.mxu0 0
      %1052 = vmatprep.subr.bf16.mxu0 0
      %1053 = vmatpush1.bf16.msra.mxu0 0
      %1054 = vmatprep.subr.bf16.mxu0 0
      %1055 = vmatpush1.bf16.msra.mxu0 0
      %1056 = vmatprep.subr.bf16.mxu0 0
      %1057 = vmatpush1.bf16.msra.mxu0 0
      %1058 = vmatprep.subr.bf16.mxu0 0
      %1059 = vmatpush1.bf16.msra.mxu0 0
      %1060 = vmatprep.subr.bf16.mxu0 0
      %1061 = vmatpush1.bf16.msra.mxu0 0
      %1062 = vmatprep.subr.bf16.mxu0 0
      %1063 = vmatpush1.bf16.msra.mxu0 0
      %1064 = vmatprep.subr.bf16.mxu0 0
      %1065 = vmatpush1.bf16.msra.mxu0 0
      %1066 = vmatprep.subr.bf16.mxu0 0
      %1067 = vmatpush1.bf16.msra.mxu0 0
      %1068 = vmatprep.subr.bf16.mxu0 0
      %1069 = vmatpush1.bf16.msra.mxu0 0
      %1070 = vmatprep.subr.bf16.mxu0 0
      %1071 = vmatpush1.bf16.msra.mxu0 0
      %1072 = vmatprep.subr.bf16.mxu0 0
      %1073 = vmatpush1.bf16.msra.mxu0 0
      %1074 = vmatprep.subr.bf16.mxu0 0
      %1075 = vmatpush1.bf16.msra.mxu0 0
      %1076 = vmatprep.subr.bf16.mxu0 0
      %1077 = vmatpush1.bf16.msra.mxu0 0
      %1078 = vmatprep.mubr.bf16.mxu0 0
      %1079 = vmatmul.mubr.bf16.gmra.mrb[0].mxu0 %v231
      %v1080 = vpop.f32.mrb[0].mxu0
      %v1081 = vadd.f32 0.0, %v1080
      %v1082 = vpop.f32.mrb[0].mxu0
      %v1083 = vpop.f32.mrb[0].mxu0
      %v1084 = vadd.f32 0.0, %v1083
      %v1085 = vpop.f32.mrb[0].mxu0
      %1086 = vmatprep.mubr.bf16.mxu0 0
      %1087 = vmatmul.mubr.bf16.gmra.mrb[0].mxu0 %v234
      %v1088 = vpop.f32.mrb[0].mxu0
      %v1089 = vadd.f32 0.0, %v1088
      %v1090 = vpop.f32.mrb[0].mxu0
      %v1091 = vpop.f32.mrb[0].mxu0
      %v1092 = vpop.f32.mrb[0].mxu0
      %1093 = vdwg.mxu0
      %v1094 = vld [vmem:[%s1] sm:$0xf]
      %vm1095 = vcmask 31744
      %v1097 = vsel %vm1095, %v271, 0
      %v1100 = vsel %vm1095, %v274, 0
      %v1103 = vsel %vm1095, %v279, 0
      %v1106 = vsel %vm1095, %v325, 0
      %v1109 = vsel %vm1095, %v328, 0
      %v1112 = vsel %vm1095, %v333, 0
      %v1115 = vsel %vm1095, %v379, 0
      %v1118 = vsel %vm1095, %v382, 0
      %v1121 = vsel %vm1095, %v387, 0
      %v1124 = vsel %vm1095, %v433, 0
      %v1127 = vsel %vm1095, %v436, 0
      %v1130 = vsel %vm1095, %v441, 0
      %v1133 = vsel %vm1095, %v487, 0
      %v1136 = vsel %vm1095, %v490, 0
      %v1139 = vsel %vm1095, %v495, 0
      %v1142 = vsel %vm1095, %v541, 0
      %v1145 = vsel %vm1095, %v544, 0
      %v1148 = vsel %vm1095, %v549, 0
      %v1151 = vsel %vm1095, %v595, 0
      %v1154 = vsel %vm1095, %v598, 0
      %v1157 = vsel %vm1095, %v603, 0
      %v1160 = vsel %vm1095, %v649, 0
      %v1163 = vsel %vm1095, %v652, 0
      %v1166 = vsel %vm1095, %v657, 0
      %v1169 = vsel %vm1095, %v703, 0
      %v1172 = vsel %vm1095, %v706, 0
      %v1175 = vsel %vm1095, %v711, 0
      %v1178 = vsel %vm1095, %v757, 0
      %v1181 = vsel %vm1095, %v760, 0
      %v1184 = vsel %vm1095, %v765, 0
      %v1187 = vsel %vm1095, %v811, 0
      %v1190 = vsel %vm1095, %v814, 0
      %v1193 = vsel %vm1095, %v819, 0
      %v1196 = vsel %vm1095, %v865, 0
      %v1199 = vsel %vm1095, %v868, 0
      %v1202 = vsel %vm1095, %v873, 0
      %v1205 = vsel %vm1095, %v919, 0
      %v1208 = vsel %vm1095, %v922, 0
      %v1211 = vsel %vm1095, %v927, 0
      %v1214 = vsel %vm1095, %v973, 0
      %v1217 = vsel %vm1095, %v976, 0
      %v1220 = vsel %vm1095, %v981, 0
      %v1223 = vsel %vm1095, %v1027, 0
      %v1226 = vsel %vm1095, %v1030, 0
      %v1229 = vsel %vm1095, %v1035, 0
      %v1232 = vsel %vm1095, %v1081, 0
      %v1235 = vsel %vm1095, %v1084, 0
      %v1238 = vsel %vm1095, %v1089, 0
      %vm1240 = vcmask 1043456
      %v1242 = vsel %vm1240, %v1094, 0
      %1244 = vmatprep.subr.mxu0 0.0
      %1245 = vmatpush1.msra.mxu0 %v1242
      %1246 = vmatprep.subr.mxu0 0.0
      %1247 = vmatpush1.msra.mxu0 0.0
      %1248 = vmatprep.subr.mxu0 0.0
      %1249 = vmatpush1.msra.mxu0 0.0
      %1250 = vmatprep.subr.mxu0 0.0
      %1251 = vmatpush1.msra.mxu0 0.0
      %1252 = vmatprep.subr.mxu0 0.0
      %1253 = vmatpush1.msra.mxu0 0.0
      %1254 = vmatprep.subr.mxu0 0.0
      %1255 = vmatpush1.msra.mxu0 0.0
      %1256 = vmatprep.subr.mxu0 0.0
      %1257 = vmatpush1.msra.mxu0 0.0
      %1258 = vmatprep.subr.mxu0 0.0
      %1259 = vmatpush1.msra.mxu0 0.0
      %1260 = vmatprep.subr.mxu0 0.0
      %1261 = vmatpush1.msra.mxu0 0.0
      %1262 = vmatprep.subr.mxu0 0.0
      %1263 = vmatpush1.msra.mxu0 0.0
      %1264 = vmatprep.subr.mxu0 0.0
      %1265 = vmatpush1.msra.mxu0 0.0
      %1266 = vmatprep.subr.mxu0 0.0
      %1267 = vmatpush1.msra.mxu0 0.0
      %1268 = vmatprep.subr.mxu0 0.0
      %1269 = vmatpush1.msra.mxu0 0.0
      %1270 = vmatprep.subr.mxu0 0.0
      %1271 = vmatpush1.msra.mxu0 0.0
      %1272 = vmatprep.subr.mxu0 0.0
      %1273 = vmatpush1.msra.mxu0 0.0
      %1274 = vmatprep.subr.mxu0 0.0
      %1275 = vmatpush1.msra.mxu0 0.0
      %1276 = vmatprep.subr.mxu0 0.0
      %1277 = vmatpush1.msra.mxu0 0.0
      %1278 = vmatprep.subr.mxu0 0.0
      %1279 = vmatpush1.msra.mxu0 0.0
      %1280 = vmatprep.subr.mxu0 0.0
      %1281 = vmatpush1.msra.mxu0 0.0
      %1282 = vmatprep.subr.mxu0 0.0
      %1283 = vmatpush1.msra.mxu0 0.0
      %1284 = vmatprep.subr.mxu0 0.0
      %1285 = vmatpush1.msra.mxu0 0.0
      %1286 = vmatprep.subr.mxu0 0.0
      %1287 = vmatpush1.msra.mxu0 0.0
      %1288 = vmatprep.subr.mxu0 0.0
      %1289 = vmatpush1.msra.mxu0 0.0
      %1290 = vmatprep.subr.mxu0 0.0
      %1291 = vmatpush1.msra.mxu0 0.0
      %1292 = vmatprep.subr.mxu0 0.0
      %1293 = vmatpush1.msra.mxu0 0.0
      %1294 = vmatprep.subr.mxu0 0.0
      %1295 = vmatpush1.msra.mxu0 0.0
      %1296 = vmatprep.subr.mxu0 0.0
      %1297 = vmatpush1.msra.mxu0 0.0
      %1298 = vmatprep.subr.mxu0 0.0
      %1299 = vmatpush1.msra.mxu0 0.0
      %1300 = vmatprep.subr.mxu0 0.0
      %1301 = vmatpush1.msra.mxu0 0.0
      %1302 = vmatprep.subr.mxu0 0.0
      %1303 = vmatpush1.msra.mxu0 0.0
      %1304 = vmatprep.subr.mxu0 0.0
      %1305 = vmatpush1.msra.mxu0 0.0
      %1306 = vmatprep.subr.mxu0 0.0
      %1307 = vmatpush1.msra.mxu0 0.0
      %1308 = vmatprep.mubr.f32.mxu0 0.0
      %1309 = vmatmul.mubr.f32.gmra.mrb[0].mxu0 %v1097
      %v1310 = vpop.f32.mrb[0].mxu0
      %v1311 = vadd.f32 0.0, %v1310
      %v1312 = vpop.f32.mrb[0].mxu0
      %1313 = vmatprep.mubr.f32.mxu0 0.0
      %1314 = vmatmul.mubr.f32.gmra.mrb[0].mxu0 %v1100
      %v1315 = vpop.f32.mrb[0].mxu0
      %v1316 = vadd.f32 0.0, %v1315
      %v1317 = vpop.f32.mrb[0].mxu0
      %1318 = vmatprep.mubr.f32.mxu0 0.0
      %1319 = vmatmul.mubr.f32.gmra.mrb[0].mxu0 %v1103
      %v1320 = vpop.f32.mrb[0].mxu0
      %v1321 = vadd.f32 0.0, %v1320
      %v1322 = vpop.f32.mrb[0].mxu0
      %1323 = vmatprep.mubr.f32.mxu0 0.0
      %1324 = vmatmul.mubr.f32.gmra.mrb[0].mxu0 %v1106
      %v1325 = vpop.f32.mrb[0].mxu0
      %v1326 = vadd.f32 0.0, %v1325
      %v1327 = vpop.f32.mrb[0].mxu0
      %1328 = vmatprep.mubr.f32.mxu0 0.0
      %1329 = vmatmul.mubr.f32.gmra.mrb[0].mxu0 %v1109
      %v1330 = vpop.f32.mrb[0].mxu0
      %v1331 = vadd.f32 0.0, %v1330
      %v1332 = vpop.f32.mrb[0].mxu0
      %1333 = vmatprep.mubr.f32.mxu0 0.0
      %1334 = vmatmul.mubr.f32.gmra.mrb[0].mxu0 %v1112
      %v1335 = vpop.f32.mrb[0].mxu0
      %v1336 = vadd.f32 0.0, %v1335
      %v1337 = vpop.f32.mrb[0].mxu0
      %1338 = vmatprep.mubr.f32.mxu0 0.0
      %1339 = vmatmul.mubr.f32.gmra.mrb[0].mxu0 %v1115
      %v1340 = vpop.f32.mrb[0].mxu0
      %v1341 = vadd.f32 0.0, %v1340
      %v1342 = vpop.f32.mrb[0].mxu0
      %1343 = vmatprep.mubr.f32.mxu0 0.0
      %1344 = vmatmul.mubr.f32.gmra.mrb[0].mxu0 %v1118
      %v1345 = vpop.f32.mrb[0].mxu0
      %v1346 = vadd.f32 0.0, %v1345
      %v1347 = vpop.f32.mrb[0].mxu0
      %1348 = vmatprep.mubr.f32.mxu0 0.0
      %1349 = vmatmul.mubr.f32.gmra.mrb[0].mxu0 %v1121
      %v1350 = vpop.f32.mrb[0].mxu0
      %v1351 = vadd.f32 0.0, %v1350
      %v1352 = vpop.f32.mrb[0].mxu0
      %1353 = vmatprep.mubr.f32.mxu0 0.0
      %1354 = vmatmul.mubr.f32.gmra.mrb[0].mxu0 %v1124
      %v1355 = vpop.f32.mrb[0].mxu0
      %v1356 = vadd.f32 0.0, %v1355
      %v1357 = vpop.f32.mrb[0].mxu0
      %1358 = vmatprep.mubr.f32.mxu0 0.0
      %1359 = vmatmul.mubr.f32.gmra.mrb[0].mxu0 %v1127
      %v1360 = vpop.f32.mrb[0].mxu0
      %v1361 = vadd.f32 0.0, %v1360
      %v1362 = vpop.f32.mrb[0].mxu0
      %1363 = vmatprep.mubr.f32.mxu0 0.0
      %1364 = vmatmul.mubr.f32.gmra.mrb[0].mxu0 %v1130
      %v1365 = vpop.f32.mrb[0].mxu0
      %v1366 = vadd.f32 0.0, %v1365
      %v1367 = vpop.f32.mrb[0].mxu0
      %1368 = vmatprep.mubr.f32.mxu0 0.0
      %1369 = vmatmul.mubr.f32.gmra.mrb[0].mxu0 %v1133
      %v1370 = vpop.f32.mrb[0].mxu0
      %v1371 = vadd.f32 0.0, %v1370
      %v1372 = vpop.f32.mrb[0].mxu0
      %1373 = vmatprep.mubr.f32.mxu0 0.0
      %1374 = vmatmul.mubr.f32.gmra.mrb[0].mxu0 %v1136
      %v1375 = vpop.f32.mrb[0].mxu0
      %v1376 = vadd.f32 0.0, %v1375
      %v1377 = vpop.f32.mrb[0].mxu0
      %1378 = vmatprep.mubr.f32.mxu0 0.0
      %1379 = vmatmul.mubr.f32.gmra.mrb[0].mxu0 %v1139
      %v1380 = vpop.f32.mrb[0].mxu0
      %v1381 = vadd.f32 0.0, %v1380
      %v1382 = vpop.f32.mrb[0].mxu0
      %1383 = vmatprep.mubr.f32.mxu0 0.0
      %1384 = vmatmul.mubr.f32.gmra.mrb[0].mxu0 %v1142
      %v1385 = vpop.f32.mrb[0].mxu0
      %v1386 = vadd.f32 0.0, %v1385
      %v1387 = vpop.f32.mrb[0].mxu0
      %1388 = vmatprep.mubr.f32.mxu0 0.0
      %1389 = vmatmul.mubr.f32.gmra.mrb[0].mxu0 %v1145
      %v1390 = vpop.f32.mrb[0].mxu0
      %v1391 = vadd.f32 0.0, %v1390
      %v1392 = vpop.f32.mrb[0].mxu0
      %1393 = vmatprep.mubr.f32.mxu0 0.0
      %1394 = vmatmul.mubr.f32.gmra.mrb[0].mxu0 %v1148
      %v1395 = vpop.f32.mrb[0].mxu0
      %v1396 = vadd.f32 0.0, %v1395
      %v1397 = vpop.f32.mrb[0].mxu0
      %1398 = vmatprep.mubr.f32.mxu0 0.0
      %1399 = vmatmul.mubr.f32.gmra.mrb[0].mxu0 %v1151
      %v1400 = vpop.f32.mrb[0].mxu0
      %v1401 = vadd.f32 0.0, %v1400
      %v1402 = vpop.f32.mrb[0].mxu0
      %1403 = vmatprep.mubr.f32.mxu0 0.0
      %1404 = vmatmul.mubr.f32.gmra.mrb[0].mxu0 %v1154
      %v1405 = vpop.f32.mrb[0].mxu0
      %v1406 = vadd.f32 0.0, %v1405
      %v1407 = vpop.f32.mrb[0].mxu0
      %1408 = vmatprep.mubr.f32.mxu0 0.0
      %1409 = vmatmul.mubr.f32.gmra.mrb[0].mxu0 %v1157
      %v1410 = vpop.f32.mrb[0].mxu0
      %v1411 = vadd.f32 0.0, %v1410
      %v1412 = vpop.f32.mrb[0].mxu0
      %1413 = vmatprep.mubr.f32.mxu0 0.0
      %1414 = vmatmul.mubr.f32.gmra.mrb[0].mxu0 %v1160
      %v1415 = vpop.f32.mrb[0].mxu0
      %v1416 = vadd.f32 0.0, %v1415
      %v1417 = vpop.f32.mrb[0].mxu0
      %1418 = vmatprep.mubr.f32.mxu0 0.0
      %1419 = vmatmul.mubr.f32.gmra.mrb[0].mxu0 %v1163
      %v1420 = vpop.f32.mrb[0].mxu0
      %v1421 = vadd.f32 0.0, %v1420
      %v1422 = vpop.f32.mrb[0].mxu0
      %1423 = vmatprep.mubr.f32.mxu0 0.0
      %1424 = vmatmul.mubr.f32.gmra.mrb[0].mxu0 %v1166
      %v1425 = vpop.f32.mrb[0].mxu0
      %v1426 = vadd.f32 0.0, %v1425
      %v1427 = vpop.f32.mrb[0].mxu0
      %1428 = vmatprep.mubr.f32.mxu0 0.0
      %1429 = vmatmul.mubr.f32.gmra.mrb[0].mxu0 %v1169
      %v1430 = vpop.f32.mrb[0].mxu0
      %v1431 = vadd.f32 0.0, %v1430
      %v1432 = vpop.f32.mrb[0].mxu0
      %1433 = vmatprep.mubr.f32.mxu0 0.0
      %1434 = vmatmul.mubr.f32.gmra.mrb[0].mxu0 %v1172
      %v1435 = vpop.f32.mrb[0].mxu0
      %v1436 = vadd.f32 0.0, %v1435
      %v1437 = vpop.f32.mrb[0].mxu0
      %1438 = vmatprep.mubr.f32.mxu0 0.0
      %1439 = vmatmul.mubr.f32.gmra.mrb[0].mxu0 %v1175
      %v1440 = vpop.f32.mrb[0].mxu0
      %v1441 = vadd.f32 0.0, %v1440
      %v1442 = vpop.f32.mrb[0].mxu0
      %1443 = vmatprep.mubr.f32.mxu0 0.0
      %1444 = vmatmul.mubr.f32.gmra.mrb[0].mxu0 %v1178
      %v1445 = vpop.f32.mrb[0].mxu0
      %v1446 = vadd.f32 0.0, %v1445
      %v1447 = vpop.f32.mrb[0].mxu0
      %1448 = vmatprep.mubr.f32.mxu0 0.0
      %1449 = vmatmul.mubr.f32.gmra.mrb[0].mxu0 %v1181
      %v1450 = vpop.f32.mrb[0].mxu0
      %v1451 = vadd.f32 0.0, %v1450
      %v1452 = vpop.f32.mrb[0].mxu0
      %1453 = vmatprep.mubr.f32.mxu0 0.0
      %1454 = vmatmul.mubr.f32.gmra.mrb[0].mxu0 %v1184
      %v1455 = vpop.f32.mrb[0].mxu0
      %v1456 = vadd.f32 0.0, %v1455
      %v1457 = vpop.f32.mrb[0].mxu0
      %1458 = vmatprep.mubr.f32.mxu0 0.0
      %1459 = vmatmul.mubr.f32.gmra.mrb[0].mxu0 %v1187
      %v1460 = vpop.f32.mrb[0].mxu0
      %v1461 = vadd.f32 0.0, %v1460
      %v1462 = vpop.f32.mrb[0].mxu0
      %1463 = vmatprep.mubr.f32.mxu0 0.0
      %1464 = vmatmul.mubr.f32.gmra.mrb[0].mxu0 %v1190
      %v1465 = vpop.f32.mrb[0].mxu0
      %v1466 = vadd.f32 0.0, %v1465
      %v1467 = vpop.f32.mrb[0].mxu0
      %1468 = vmatprep.mubr.f32.mxu0 0.0
      %1469 = vmatmul.mubr.f32.gmra.mrb[0].mxu0 %v1193
      %v1470 = vpop.f32.mrb[0].mxu0
      %v1471 = vadd.f32 0.0, %v1470
      %v1472 = vpop.f32.mrb[0].mxu0
      %1473 = vmatprep.mubr.f32.mxu0 0.0
      %1474 = vmatmul.mubr.f32.gmra.mrb[0].mxu0 %v1196
      %v1475 = vpop.f32.mrb[0].mxu0
      %v1476 = vadd.f32 0.0, %v1475
      %v1477 = vpop.f32.mrb[0].mxu0
      %1478 = vmatprep.mubr.f32.mxu0 0.0
      %1479 = vmatmul.mubr.f32.gmra.mrb[0].mxu0 %v1199
      %v1480 = vpop.f32.mrb[0].mxu0
      %v1481 = vadd.f32 0.0, %v1480
      %v1482 = vpop.f32.mrb[0].mxu0
      %1483 = vmatprep.mubr.f32.mxu0 0.0
      %1484 = vmatmul.mubr.f32.gmra.mrb[0].mxu0 %v1202
      %v1485 = vpop.f32.mrb[0].mxu0
      %v1486 = vadd.f32 0.0, %v1485
      %v1487 = vpop.f32.mrb[0].mxu0
      %1488 = vmatprep.mubr.f32.mxu0 0.0
      %1489 = vmatmul.mubr.f32.gmra.mrb[0].mxu0 %v1205
      %v1490 = vpop.f32.mrb[0].mxu0
      %v1491 = vadd.f32 0.0, %v1490
      %v1492 = vpop.f32.mrb[0].mxu0
      %1493 = vmatprep.mubr.f32.mxu0 0.0
      %1494 = vmatmul.mubr.f32.gmra.mrb[0].mxu0 %v1208
      %v1495 = vpop.f32.mrb[0].mxu0
      %v1496 = vadd.f32 0.0, %v1495
      %v1497 = vpop.f32.mrb[0].mxu0
      %1498 = vmatprep.mubr.f32.mxu0 0.0
      %1499 = vmatmul.mubr.f32.gmra.mrb[0].mxu0 %v1211
      %v1500 = vpop.f32.mrb[0].mxu0
      %v1501 = vadd.f32 0.0, %v1500
      %v1502 = vpop.f32.mrb[0].mxu0
      %1503 = vmatprep.mubr.f32.mxu0 0.0
      %1504 = vmatmul.mubr.f32.gmra.mrb[0].mxu0 %v1214
      %v1505 = vpop.f32.mrb[0].mxu0
      %v1506 = vadd.f32 0.0, %v1505
      %v1507 = vpop.f32.mrb[0].mxu0
      %1508 = vmatprep.mubr.f32.mxu0 0.0
      %1509 = vmatmul.mubr.f32.gmra.mrb[0].mxu0 %v1217
      %v1510 = vpop.f32.mrb[0].mxu0
      %v1511 = vadd.f32 0.0, %v1510
      %v1512 = vpop.f32.mrb[0].mxu0
      %1513 = vmatprep.mubr.f32.mxu0 0.0
      %1514 = vmatmul.mubr.f32.gmra.mrb[0].mxu0 %v1220
      %v1515 = vpop.f32.mrb[0].mxu0
      %v1516 = vadd.f32 0.0, %v1515
      %v1517 = vpop.f32.mrb[0].mxu0
      %1518 = vmatprep.mubr.f32.mxu0 0.0
      %1519 = vmatmul.mubr.f32.gmra.mrb[0].mxu0 %v1223
      %v1520 = vpop.f32.mrb[0].mxu0
      %v1521 = vadd.f32 0.0, %v1520
      %v1522 = vpop.f32.mrb[0].mxu0
      %1523 = vmatprep.mubr.f32.mxu0 0.0
      %1524 = vmatmul.mubr.f32.gmra.mrb[0].mxu0 %v1226
      %v1525 = vpop.f32.mrb[0].mxu0
      %v1526 = vadd.f32 0.0, %v1525
      %v1527 = vpop.f32.mrb[0].mxu0
      %1528 = vmatprep.mubr.f32.mxu0 0.0
      %1529 = vmatmul.mubr.f32.gmra.mrb[0].mxu0 %v1229
      %v1530 = vpop.f32.mrb[0].mxu0
      %v1531 = vadd.f32 0.0, %v1530
      %v1532 = vpop.f32.mrb[0].mxu0
      %1533 = vmatprep.mubr.f32.mxu0 0.0
      %1534 = vmatmul.mubr.f32.gmra.mrb[0].mxu0 %v1232
      %v1535 = vpop.f32.mrb[0].mxu0
      %v1536 = vadd.f32 0.0, %v1535
      %v1537 = vpop.f32.mrb[0].mxu0
      %1538 = vmatprep.mubr.f32.mxu0 0.0
      %1539 = vmatmul.mubr.f32.gmra.mrb[0].mxu0 %v1235
      %v1540 = vpop.f32.mrb[0].mxu0
      %v1541 = vadd.f32 0.0, %v1540
      %v1542 = vpop.f32.mrb[0].mxu0
      %1543 = vmatprep.mubr.f32.mxu0 0.0
      %1544 = vmatmul.mubr.f32.gmra.mrb[0].mxu0 %v1238
      %v1545 = vpop.f32.mrb[0].mxu0
      %v1546 = vadd.f32 0.0, %v1545
      %v1547 = vpop.f32.mrb[0].mxu0
      %1548 = vdwg.mxu0
      %vm1549 = vcmask 261120
      %1550 = vst.msk [vmem:[%s177] sm:$0xff] %vm1549, %v1311
      %1551 = vst.msk [vmem:[%s177 + $0x8] sm:$0xff] %vm1549, %v1316
      %1552 = vst.msk [vmem:[%s177 + $0x10] sm:$0xff] %vm1549, %v1321
      %1553 = vst.msk [vmem:[%s177 + $0x18] sm:$0xff] %vm1549, %v1326
      %1554 = vst.msk [vmem:[%s177 + $0x20] sm:$0xff] %vm1549, %v1331
      %1555 = vst.msk [vmem:[%s177 + $0x28] sm:$0xff] %vm1549, %v1336
      %1556 = vst.msk [vmem:[%s177 + $0x30] sm:$0xff] %vm1549, %v1341
      %1557 = vst.msk [vmem:[%s177 + $0x38] sm:$0xff] %vm1549, %v1346
      %1558 = vst.msk [vmem:[%s177 + $0x40] sm:$0xff] %vm1549, %v1351
      %1559 = vst.msk [vmem:[%s177 + $0x48] sm:$0xff] %vm1549, %v1356
      %1560 = vst.msk [vmem:[%s177 + $0x50] sm:$0xff] %vm1549, %v1361
      %1561 = vst.msk [vmem:[%s177 + $0x58] sm:$0xff] %vm1549, %v1366
      %1562 = vst.msk [vmem:[%s177 + $0x60] sm:$0xff] %vm1549, %v1371
      %1563 = vst.msk [vmem:[%s177 + $0x68] sm:$0xff] %vm1549, %v1376
      %1564 = vst.msk [vmem:[%s177 + $0x70] sm:$0xff] %vm1549, %v1381
      %1565 = vst.msk [vmem:[%s177 + $0x78] sm:$0xff] %vm1549, %v1386
      %1566 = vst.msk [vmem:[%s177 + $0x80] sm:$0xff] %vm1549, %v1391
      %1567 = vst.msk [vmem:[%s177 + $0x88] sm:$0xff] %vm1549, %v1396
      %1568 = vst.msk [vmem:[%s177 + $0x90] sm:$0xff] %vm1549, %v1401
      %1569 = vst.msk [vmem:[%s177 + $0x98] sm:$0xff] %vm1549, %v1406
      %1570 = vst.msk [vmem:[%s177 + $0xa0] sm:$0xff] %vm1549, %v1411
      %1571 = vst.msk [vmem:[%s177 + $0xa8] sm:$0xff] %vm1549, %v1416
      %1572 = vst.msk [vmem:[%s177 + $0xb0] sm:$0xff] %vm1549, %v1421
      %1573 = vst.msk [vmem:[%s177 + $0xb8] sm:$0xff] %vm1549, %v1426
      %1574 = vst.msk [vmem:[%s177 + $0xc0] sm:$0xff] %vm1549, %v1431
      %1575 = vst.msk [vmem:[%s177 + $0xc8] sm:$0xff] %vm1549, %v1436
      %1576 = vst.msk [vmem:[%s177 + $0xd0] sm:$0xff] %vm1549, %v1441
      %1577 = vst.msk [vmem:[%s177 + $0xd8] sm:$0xff] %vm1549, %v1446
      %1578 = vst.msk [vmem:[%s177 + $0xe0] sm:$0xff] %vm1549, %v1451
      %1579 = vst.msk [vmem:[%s177 + $0xe8] sm:$0xff] %vm1549, %v1456
      %1580 = vst.msk [vmem:[%s177 + $0xf0] sm:$0xff] %vm1549, %v1461
      %1581 = vst.msk [vmem:[%s177 + $0xf8] sm:$0xff] %vm1549, %v1466
      %1582 = vst.msk [vmem:[%s177 + $0x100] sm:$0xff] %vm1549, %v1471
      %1583 = vst.msk [vmem:[%s177 + $0x108] sm:$0xff] %vm1549, %v1476
      %1584 = vst.msk [vmem:[%s177 + $0x110] sm:$0xff] %vm1549, %v1481
      %1585 = vst.msk [vmem:[%s177 + $0x118] sm:$0xff] %vm1549, %v1486
      %1586 = vst.msk [vmem:[%s177 + $0x120] sm:$0xff] %vm1549, %v1491
      %1587 = vst.msk [vmem:[%s177 + $0x128] sm:$0xff] %vm1549, %v1496
      %1588 = vst.msk [vmem:[%s177 + $0x130] sm:$0xff] %vm1549, %v1501
      %1589 = vst.msk [vmem:[%s177 + $0x138] sm:$0xff] %vm1549, %v1506
      %1590 = vst.msk [vmem:[%s177 + $0x140] sm:$0xff] %vm1549, %v1511
      %1591 = vst.msk [vmem:[%s177 + $0x148] sm:$0xff] %vm1549, %v1516
      %1592 = vst.msk [vmem:[%s177 + $0x150] sm:$0xff] %vm1549, %v1521
      %1593 = vst.msk [vmem:[%s177 + $0x158] sm:$0xff] %vm1549, %v1526
      %1594 = vst.msk [vmem:[%s177 + $0x160] sm:$0xff] %vm1549, %v1531
      %1595 = vst.msk [vmem:[%s177 + $0x168] sm:$0xff] %vm1549, %v1536
      %1596 = vst.msk [vmem:[%s177 + $0x170] sm:$0xff] %vm1549, %v1541
      %1597 = vst.msk [vmem:[%s177 + $0x178] sm:$0xff] %vm1549, %v1546
      %s1598 = smul.u32 16, %s14
      %p1599 = scmp.lt.s32.totalorder %s1598, 31
      %s1600 = scalar_select %p1599, %s1598, 31
      %s1601 = smul.addr %s1600, 3
      %s1602 = smul.addr %s1601, 8
      %s1603 = scalar_lea.vmem %s3, %s1602
      // Predicated region
      $region33: #{fre_embedding2.1} parent=31 // pred_check
        %p1604 = pneg %p100
      $region34: #{fre_embedding2.1} parent=31 // pred_check_branch
        %1606 = sbr.rel (%p1604) target = $region36
      $region35: #{fre_embedding2.1} parent=31 // pred_region
        %s1607 = smul.u32 16, %s14
      $region36: #{fre_embedding2.1} parent=31 // pred_fallthru
        _
    $region32: #{fre_embedding2.1} parent=5 // pred_fallthru
      _
    %p1608 = scmp.le.s32.totalorder 2, %s9
    // Predicated region
    $region37: #{fre_embedding2.1} parent=5 // pred_check
      %p1609 = pneg %p1608
    $region38: #{fre_embedding2.1} parent=5 // pred_check_branch
      %1611 = sbr.rel (%p1609) target = $region40
    $region39: #{fre_embedding2.1} parent=5 // pred_region
      %s1612 = ssub.s32 %s9, 2
      // Predicated region
      $region41: #{fre_embedding2.1} parent=39 // pred_check
        %p1613 = pneg %p106
      $region42: #{fre_embedding2.1} parent=39 // pred_check_branch
        %1615 = sbr.rel (%p1613) target = $region44
      $region43: #{fre_embedding2.1} parent=39 // pred_region
        %s1616 = smul.u32 16, %s15
        %p1617 = scmp.lt.s32.totalorder %s1616, 31
        %s1618 = scalar_select %p1617, %s1616, 31
        %s1619 = smul.addr %s1618, 3
        %s1620 = smul.addr %s1619, 8
        %s1621 = scalar_lea.vmem %s3, %s1620
      $region44: #{fre_embedding2.1} parent=39 // pred_fallthru
        _
    $region40: #{fre_embedding2.1} parent=5 // pred_fallthru
      _
  $region6: #{fre_embedding2.1} parent=0 // loop_footer
    %s13 = sadd.s32 1, %s9
  $region7: #{fre_embedding2.1} parent=0 // loop_footer_branch
    %8 = sbr.rel target = $region3
  $region8: #{fre_embedding2.1} parent=0 // loop_exit
    _

</llo_original>
